<compile_context>
chip_gen: v6e
topology: v6e:2x2x1
jax: 0.10.0
libtpu: 0.0.40
codegen_flags: <defaults>
</compile_context>

<pallas_src>
import math

import numpy as np
import jax
import jax.numpy as jnp
from jax.experimental import pallas as pl
from jax.experimental.pallas import tpu as pltpu

# ----------------------- synthetic ViT configuration -----------------------
B = 2                  # batch
C = 4                  # input channels
IMG = 16               # image H = W
PATCH = 8              # patch size -> 2x2 grid
N_PATCH = (IMG // PATCH) ** 2
SEQ = N_PATCH + 1      # +CLS token (real tokens)
SEQP = 8               # padded sequence length (sublane multiple)
D = 32                 # hidden size
NH = 2                 # attention heads
DH = D // NH
FF = 64                # MLP intermediate size
NLAYER = 2
FACE_CLASSES = 10
EMOTION_CLASSES = 7
HEADS_TOT = FACE_CLASSES + EMOTION_CLASSES + 1   # 18
LANE = 128             # lane-dense width for packed vectors / head output
LN_EPS = 1e-12         # HF ViT default layer_norm_eps
PPD = C * PATCH * PATCH
TP = B * SEQP          # padded token rows

# packed small-parameter row indices (one row per vector, zero-padded to 128)
R_LN1G = 0
R_LN1B = NLAYER
R_LN2G = 2 * NLAYER
R_LN2B = 3 * NLAYER
R_BQKV = 4 * NLAYER
R_BO = 5 * NLAYER
R_BFC1 = 6 * NLAYER
R_BFC2 = 7 * NLAYER
R_LNFG = 8 * NLAYER
R_LNFB = 8 * NLAYER + 1
R_BHEAD = 8 * NLAYER + 2
SP_ROWS = 8 * NLAYER + 3


# ------------------------------- kernel ------------------------------------
def _ln(x, g, b):
    # one-pass mean / mean-of-squares (independent reductions -> shorter chain)
    inv_d = 1.0 / x.shape[-1]
    s1 = jnp.sum(x, axis=-1, keepdims=True)
    s2 = jnp.sum(x * x, axis=-1, keepdims=True)
    mu = s1 * inv_d
    var = s2 * inv_d - mu * mu
    return (x - mu) * jax.lax.rsqrt(var + LN_EPS) * g + b


def vit_fused_kernel(patches_ref, wpatch_ref, base_ref, mask_ref,
                     wqkv_ref, wo_ref, wfc1_ref, wfc2_ref, sp_ref, wheads_ref,
                     o_ref):
    f32 = jnp.float32
    bf16 = jnp.bfloat16

    # ---- patch embedding (== Conv2d(C, D, P, stride=P)) + CLS/pos assembly ----
    # `patches_ref` already has rows at padded token offsets (zeros at CLS/pads),
    # `base` holds cls+pos (CLS rows), pos+conv-bias (patch rows), zeros (pads).
    x = base_ref[...] + jnp.dot(patches_ref[...], wpatch_ref[...],
                                preferred_element_type=f32)      # (TP, D) f32

    # additive attention mask: block-diagonal over batch + padded keys -> -1e9
    mask = mask_ref[...]                                         # (TP, TP) f32

    for l in range(NLAYER):                                      # static layer loop
        # ---------------- self-attention (pre-norm) ----------------
        g1 = sp_ref[R_LN1G + l:R_LN1G + l + 1, :D]
        b1 = sp_ref[R_LN1B + l:R_LN1B + l + 1, :D]
        h = _ln(x, g1, b1)                                       # (TP, D) f32

        # fused QKV projection; Q lanes/bias pre-scaled by 1/sqrt(DH)
        qkv = (jnp.dot(h.astype(bf16), wqkv_ref[l], preferred_element_type=f32)
               + sp_ref[R_BQKV + l:R_BQKV + l + 1, :])           # (TP, 128) f32

        ctx_heads = []
        for hh in range(NH):                                     # static head loop
            q = qkv[:, hh * DH:(hh + 1) * DH].astype(bf16)               # (TP, DH)
            k = qkv[:, D + hh * DH:D + (hh + 1) * DH].astype(bf16)       # (TP, DH)
            v = qkv[:, 2 * D + hh * DH:2 * D + (hh + 1) * DH].astype(bf16)

            # flat (TP, TP) scores, contracting DH (trans_b matmul), + batch/pad mask
            s = jax.lax.dot_general(q, k, (((1,), (1,)), ((), ())),
                                    preferred_element_type=f32) + mask
            m = jnp.max(s, axis=-1, keepdims=True)
            e = jnp.exp(s - m)
            p = e * pl.reciprocal(jnp.sum(e, axis=-1, keepdims=True), approx=True)
            ctx_heads.append(jnp.dot(p.astype(bf16), v,
                                     preferred_element_type=f32))        # (TP, DH)

        # lane-concatenate heads, single fused (D, D) output projection
        ctx = jnp.concatenate(ctx_heads, axis=-1).astype(bf16)   # (TP, D)
        attn = (jnp.dot(ctx, wo_ref[l], preferred_element_type=f32)
                + sp_ref[R_BO + l:R_BO + l + 1, :D])
        x = x + attn

        # ---------------- MLP (pre-norm) ----------------
        g2 = sp_ref[R_LN2G + l:R_LN2G + l + 1, :D]
        b2 = sp_ref[R_LN2B + l:R_LN2B + l + 1, :D]
        h2 = _ln(x, g2, b2)
        h2 = (jnp.dot(h2.astype(bf16), wfc1_ref[l], preferred_element_type=f32)
              + sp_ref[R_BFC1 + l:R_BFC1 + l + 1, :FF])
        # TODO(synk): HF ViT default "gelu" is erf-based; tanh-approximate GELU used here.
        h2 = jax.nn.gelu(h2, approximate=True)
        h2 = (jnp.dot(h2.astype(bf16), wfc2_ref[l], preferred_element_type=f32)
              + sp_ref[R_BFC2 + l:R_BFC2 + l + 1, :D])
        x = x + h2

    # ---- final LayerNorm + fused 3-head classifier (lane-dense output) ----
    xf = _ln(x, sp_ref[R_LNFG:R_LNFG + 1, :D], sp_ref[R_LNFB:R_LNFB + 1, :D])
    logits = (jnp.dot(xf.astype(bf16), wheads_ref[...], preferred_element_type=f32)
              + sp_ref[R_BHEAD:R_BHEAD + 1, :])
    o_ref[...] = logits.astype(o_ref.dtype)                      # (TP, 128)


# ------------------------------- wrapper ------------------------------------
def pack_params(params):
    """Repack the per-tensor parameter dict into a few lane/sublane-friendly operands."""
    f32, bf16 = jnp.float32, jnp.bfloat16
    scale = 1.0 / math.sqrt(DH)

    # Conv2d weight as a (PPD, D) matmul weight.
    w_patch = params["w_conv"].reshape(D, PPD).T.astype(bf16)

    # base slab: cls+pos on CLS rows, pos+conv-bias on patch rows, zeros on pads.
    pos = params["pos"][0]                                   # (SEQ, D)
    cls_row = (params["cls"][0, 0] + pos[0])[None, :]        # (1, D)
    patch_rows = pos[1:] + params["b_conv"]                  # (N_PATCH, D)
    per_batch = jnp.concatenate(
        [cls_row, patch_rows, jnp.zeros((SEQP - SEQ, D), f32)], axis=0)
    base = jnp.tile(per_batch, (B, 1)).astype(f32)           # (TP, D)

    # flat attention mask: query row in batch b may only see valid keys of batch b
    mask = np.full((TP, TP), -1e9, np.float32)
    for b in range(B):
        mask[b * SEQP:(b + 1) * SEQP, b * SEQP:b * SEQP + SEQ] = 0.0
    mask = jnp.asarray(mask)                                  # (TP, TP)

    # fused per-layer QKV weight (D, 128): Q lanes pre-scaled by 1/sqrt(DH), padded
    wq = params["w_qkv"][:, :, :D] * scale                    # (L, D, D)
    wkv = params["w_qkv"][:, :, D:]                           # (L, D, 2D)
    wqkv = jnp.concatenate(
        [wq, wkv, jnp.zeros((NLAYER, D, LANE - 3 * D), f32)], axis=-1).astype(bf16)

    # matching fused QKV bias (Q part pre-scaled)
    b_qkv_scaled = jnp.concatenate(
        [params["b_qkv"][:, :, :D] * scale, params["b_qkv"][:, :, D:]], axis=-1)

    wo = params["w_o"].astype(bf16)                           # (L, D, D)
    wfc1 = params["w_fc1"].astype(bf16)                       # (L, D, FF)
    wfc2 = params["w_fc2"].astype(bf16)                       # (L, FF, D)

    # all three classifier heads fused into a single lane-dense (D, 128) weight
    w_heads = jnp.concatenate(
        [params["w_face"], params["w_emo"], params["w_spoof"]], axis=1)    # (D, 18)
    w_heads = jnp.pad(w_heads, ((0, 0), (0, LANE - HEADS_TOT))).astype(bf16)

    # every small vector packed as one zero-padded row of a (SP_ROWS, 128) f32 array
    def row(v):
        v = jnp.asarray(v, f32).reshape(1, -1)
        return jnp.pad(v, ((0, 0), (0, LANE - v.shape[1])))

    rows = []
    rows += [row(params["ln1_g"][l]) for l in range(NLAYER)]
    rows += [row(params["ln1_b"][l]) for l in range(NLAYER)]
    rows += [row(params["ln2_g"][l]) for l in range(NLAYER)]
    rows += [row(params["ln2_b"][l]) for l in range(NLAYER)]
    rows += [row(b_qkv_scaled[l]) for l in range(NLAYER)]
    rows += [row(params["b_o"][l]) for l in range(NLAYER)]
    rows += [row(params["b_fc1"][l]) for l in range(NLAYER)]
    rows += [row(params["b_fc2"][l]) for l in range(NLAYER)]
    rows += [row(params["lnf_g"]), row(params["lnf_b"])]
    rows += [row(jnp.concatenate([params["b_face"], params["b_emo"],
                                  params["b_spoof"]], axis=1))]
    sp = jnp.concatenate(rows, axis=0)                        # (SP_ROWS, 128)
    assert sp.shape == (SP_ROWS, LANE)

    return dict(w_patch=w_patch, base=base, mask=mask, wqkv=wqkv, wo=wo,
                wfc1=wfc1, wfc2=wfc2, w_heads=w_heads, sp=sp)


def triple_head_vit_forward(x, params):
    packed = pack_params(params)

    # Conv2d(C, D, P, stride=P) unfold (NCHW): (B, C, H, W) -> (B, N_PATCH, C*P*P),
    # then laid directly into the padded (TP, PPD) token slab (zeros at CLS/pads)
    # so the patch-embed matmul result already sits at padded token offsets.
    p = PATCH
    xp = x.reshape(B, C, IMG // p, p, IMG // p, p).transpose(0, 2, 4, 1, 3, 5)
    patches = xp.reshape(B, N_PATCH, PPD)
    slab = jnp.zeros((B, SEQP, PPD), jnp.float32)
    slab = slab.at[:, 1:1 + N_PATCH].set(patches)
    patches_slab = slab.reshape(TP, PPD).astype(jnp.bfloat16)

    ins = (patches_slab, packed["w_patch"], packed["base"], packed["mask"],
           packed["wqkv"], packed["wo"], packed["wfc1"], packed["wfc2"],
           packed["sp"], packed["w_heads"])

    logits = pl.pallas_call(
        vit_fused_kernel,
        out_shape=jax.ShapeDtypeStruct((TP, LANE), jnp.float32),
        in_specs=[pl.BlockSpec(memory_space=pltpu.MemorySpace.VMEM)] * len(ins),
        out_specs=pl.BlockSpec(memory_space=pltpu.MemorySpace.VMEM),
    )(*ins)

    # CLS rows sit at sublane-aligned offsets 0, SEQP, 2*SEQP, ...
    cls_logits = logits[::SEQP]                               # (B, 128)
    face = cls_logits[:, :FACE_CLASSES]
    emo = cls_logits[:, FACE_CLASSES:FACE_CLASSES + EMOTION_CLASSES]
    spoof = cls_logits[:, FACE_CLASSES + EMOTION_CLASSES:HEADS_TOT]
    return face, emo, spoof


# --------------------------- parameter creation -----------------------------
def init_params(key):
    ks = jax.random.split(key, 16)

    def nrm(k, shape, s=0.02):
        return (s * jax.random.normal(k, shape)).astype(jnp.float32)

    return {
        "w_conv": nrm(ks[0], (D, C, PATCH, PATCH)),
        "b_conv": jnp.zeros((1, D), jnp.float32),
        "cls": nrm(ks[1], (1, 1, D)),
        "pos": nrm(ks[2], (1, SEQ, D)),
        "ln1_g": jnp.ones((NLAYER, 1, D), jnp.float32),
        "ln1_b": jnp.zeros((NLAYER, 1, D), jnp.float32),
        "w_qkv": nrm(ks[3], (NLAYER, D, 3 * D)),
        "b_qkv": jnp.zeros((NLAYER, 1, 3 * D), jnp.float32),
        "w_o": nrm(ks[4], (NLAYER, D, D)),
        "b_o": jnp.zeros((NLAYER, 1, D), jnp.float32),
        "ln2_g": jnp.ones((NLAYER, 1, D), jnp.float32),
        "ln2_b": jnp.zeros((NLAYER, 1, D), jnp.float32),
        "w_fc1": nrm(ks[5], (NLAYER, D, FF)),
        "b_fc1": jnp.zeros((NLAYER, 1, FF), jnp.float32),
        "w_fc2": nrm(ks[6], (NLAYER, FF, D)),
        "b_fc2": jnp.zeros((NLAYER, 1, D), jnp.float32),
        "lnf_g": jnp.ones((1, D), jnp.float32),
        "lnf_b": jnp.zeros((1, D), jnp.float32),
        "w_face": nrm(ks[7], (D, FACE_CLASSES)),
        "b_face": nrm(ks[8], (1, FACE_CLASSES)),
        "w_emo": nrm(ks[9], (D, EMOTION_CLASSES)),
        "b_emo": nrm(ks[10], (1, EMOTION_CLASSES)),
        "w_spoof": nrm(ks[11], (D, 1)),
        "b_spoof": nrm(ks[12], (1, 1)),
    }


# --------------------------- pure-JAX reference ------------------------------
def reference_forward(x, params):
    p = PATCH
    xp = x.reshape(B, C, IMG // p, p, IMG // p, p).transpose(0, 2, 4, 1, 3, 5)
    patches = xp.reshape(B, N_PATCH, PPD)
    w_patch = params["w_conv"].reshape(D, PPD).T
    pe = patches @ w_patch + params["b_conv"][0]
    h = jnp.concatenate([jnp.broadcast_to(params["cls"], (B, 1, D)), pe], axis=1)
    h = h + params["pos"]

    def ln(v, g, b):
        mu = v.mean(-1, keepdims=True)
        var = ((v - mu) ** 2).mean(-1, keepdims=True)
        return (v - mu) / jnp.sqrt(var + LN_EPS) * g + b

    for l in range(NLAYER):
        a = ln(h, params["ln1_g"][l], params["ln1_b"][l])
        qkv = a @ params["w_qkv"][l] + params["b_qkv"][l]
        q, k, v = qkv[..., :D], qkv[..., D:2 * D], qkv[..., 2 * D:]
        q = q.reshape(B, SEQ, NH, DH).transpose(0, 2, 1, 3)
        k = k.reshape(B, SEQ, NH, DH).transpose(0, 2, 1, 3)
        v = v.reshape(B, SEQ, NH, DH).transpose(0, 2, 1, 3)
        s = (q @ k.transpose(0, 1, 3, 2)) / math.sqrt(DH)
        w = jax.nn.softmax(s, axis=-1)
        o = (w @ v).transpose(0, 2, 1, 3).reshape(B, SEQ, D)
        o = o @ params["w_o"][l] + params["b_o"][l]
        h = h + o
        m = ln(h, params["ln2_g"][l], params["ln2_b"][l])
        m = jax.nn.gelu(m @ params["w_fc1"][l] + params["b_fc1"][l], approximate=True)
        m = m @ params["w_fc2"][l] + params["b_fc2"][l]
        h = h + m
    hf = ln(h, params["lnf_g"], params["lnf_b"])
    cls = hf[:, 0]
    return (cls @ params["w_face"] + params["b_face"][0],
            cls @ params["w_emo"] + params["b_emo"][0],
            cls @ params["w_spoof"] + params["b_spoof"][0])


# ----------------------------------- main ------------------------------------
if __name__ == "__main__":
    key = jax.random.PRNGKey(0)
    kx, kp = jax.random.split(key)
    x = jax.random.normal(kx, (B, C, IMG, IMG), dtype=jnp.float32)
    params = init_params(kp)

    face, emo, spoof = jax.block_until_ready(triple_head_vit_forward(x, params))

    assert face.shape == (B, FACE_CLASSES)
    assert emo.shape == (B, EMOTION_CLASSES)
    assert spoof.shape == (B, 1)

    rf, re, rs = reference_forward(x, params)
    # Tolerance covers bf16 matmul operands + approx reciprocal vs. f32 reference.
    for got, want in ((face, rf), (emo, re), (spoof, rs)):
        np.testing.assert_allclose(np.asarray(got), np.asarray(want),
                                   rtol=5e-2, atol=5e-3)

    print("KERNEL_OK")
</pallas_src>

<mosaic_0001>
module attributes {stable_mosaic.version = 11 : i64} {
  func.func @vit_fused_kernel(%arg0: memref<16x256xbf16, #tpu.memory_space<vmem>>, %arg1: memref<256x32xbf16, #tpu.memory_space<vmem>>, %arg2: memref<16x32xf32, #tpu.memory_space<vmem>>, %arg3: memref<16x16xf32, #tpu.memory_space<vmem>>, %arg4: memref<2x32x128xbf16, #tpu.memory_space<vmem>>, %arg5: memref<2x32x32xbf16, #tpu.memory_space<vmem>>, %arg6: memref<2x32x64xbf16, #tpu.memory_space<vmem>>, %arg7: memref<2x64x32xbf16, #tpu.memory_space<vmem>>, %arg8: memref<19x128xf32, #tpu.memory_space<vmem>>, %arg9: memref<32x128xbf16, #tpu.memory_space<vmem>>, %arg10: memref<16x128xf32, #tpu.memory_space<vmem>>) attributes {dimension_semantics = [], scalar_prefetch = 0 : i64, scratch_operands = 0 : i64, tpu.core_type = #tpu.core_type<tc>} {
    %c0 = arith.constant 0 : index
    %c0_0 = arith.constant 0 : index
    %0 = vector.load %arg2[%c0, %c0_0] : memref<16x32xf32, #tpu.memory_space<vmem>>, vector<16x32xf32>
    %c0_1 = arith.constant 0 : index
    %c0_2 = arith.constant 0 : index
    %1 = vector.load %arg0[%c0_1, %c0_2] : memref<16x256xbf16, #tpu.memory_space<vmem>>, vector<16x256xbf16>
    %c0_3 = arith.constant 0 : index
    %c0_4 = arith.constant 0 : index
    %2 = vector.load %arg1[%c0_3, %c0_4] : memref<256x32xbf16, #tpu.memory_space<vmem>>, vector<256x32xbf16>
    %cst = arith.constant dense<0.000000e+00> : vector<16x32xf32>
    %3 = tpu.matmul %1, %2, %cst {dimension_numbers = #tpu.dot_dimension_numbers<[1], [0], [0], [1], [0, 0, 1, 1], [], []>} : vector<16x256xbf16>, vector<256x32xbf16>, vector<16x32xf32> -> vector<16x32xf32>
    %4 = arith.addf %0, %3 : vector<16x32xf32>
    %c0_5 = arith.constant 0 : index
    %c0_6 = arith.constant 0 : index
    %5 = vector.load %arg3[%c0_5, %c0_6] : memref<16x16xf32, #tpu.memory_space<vmem>>, vector<16x16xf32>
    %c0_7 = arith.constant 0 : index
    %c0_8 = arith.constant 0 : index
    %6 = vector.load %arg8[%c0_7, %c0_8] : memref<19x128xf32, #tpu.memory_space<vmem>>, vector<1x32xf32>
    %c2 = arith.constant 2 : index
    %c0_9 = arith.constant 0 : index
    %7 = vector.load %arg8[%c2, %c0_9] : memref<19x128xf32, #tpu.memory_space<vmem>>, vector<1x32xf32>
    %cst_10 = arith.constant dense<0.000000e+00> : vector<16xf32>
    %8 = vector.multi_reduction <add>, %4, %cst_10 [1] : vector<16x32xf32> to vector<16xf32>
    %9 = vector.shape_cast %8 : vector<16xf32> to vector<16x1xf32>
    %10 = arith.mulf %4, %4 : vector<16x32xf32>
    %cst_11 = arith.constant dense<0.000000e+00> : vector<16xf32>
    %11 = vector.multi_reduction <add>, %10, %cst_11 [1] : vector<16x32xf32> to vector<16xf32>
    %12 = vector.shape_cast %11 : vector<16xf32> to vector<16x1xf32>
    %cst_12 = arith.constant 3.125000e-02 : f32
    %13 = vector.broadcast %cst_12 : f32 to vector<16x1xf32>
    %14 = arith.mulf %9, %13 : vector<16x1xf32>
    %cst_13 = arith.constant 3.125000e-02 : f32
    %15 = vector.broadcast %cst_13 : f32 to vector<16x1xf32>
    %16 = arith.mulf %12, %15 : vector<16x1xf32>
    %17 = arith.mulf %14, %14 : vector<16x1xf32>
    %18 = arith.subf %16, %17 : vector<16x1xf32>
    %19 = vector.broadcast %14 : vector<16x1xf32> to vector<16x32xf32>
    %20 = arith.subf %4, %19 : vector<16x32xf32>
    %cst_14 = arith.constant 9.99999996E-13 : f32
    %21 = vector.broadcast %cst_14 : f32 to vector<16x1xf32>
    %22 = arith.addf %18, %21 : vector<16x1xf32>
    %23 = math.rsqrt %22 : vector<16x1xf32>
    %24 = vector.broadcast %23 : vector<16x1xf32> to vector<16x32xf32>
    %25 = arith.mulf %20, %24 : vector<16x32xf32>
    %26 = vector.broadcast %6 : vector<1x32xf32> to vector<16x32xf32>
    %27 = arith.mulf %25, %26 : vector<16x32xf32>
    %28 = vector.broadcast %7 : vector<1x32xf32> to vector<16x32xf32>
    %29 = arith.addf %27, %28 : vector<16x32xf32>
    %30 = arith.truncf %29 : vector<16x32xf32> to vector<16x32xbf16>
    %c0_15 = arith.constant 0 : index
    %c0_16 = arith.constant 0 : index
    %c0_17 = arith.constant 0 : index
    %31 = vector.load %arg4[%c0_15, %c0_16, %c0_17] : memref<2x32x128xbf16, #tpu.memory_space<vmem>>, vector<1x32x128xbf16>
    %32 = vector.shape_cast %31 : vector<1x32x128xbf16> to vector<32x128xbf16>
    %cst_18 = arith.constant dense<0.000000e+00> : vector<16x128xf32>
    %33 = tpu.matmul %30, %32, %cst_18 {dimension_numbers = #tpu.dot_dimension_numbers<[1], [0], [0], [1], [0, 0, 1, 1], [], []>} : vector<16x32xbf16>, vector<32x128xbf16>, vector<16x128xf32> -> vector<16x128xf32>
    %c8 = arith.constant 8 : index
    %c0_19 = arith.constant 0 : index
    %34 = vector.load %arg8[%c8, %c0_19] : memref<19x128xf32, #tpu.memory_space<vmem>>, vector<1x128xf32>
    %35 = vector.broadcast %34 : vector<1x128xf32> to vector<16x128xf32>
    %36 = arith.addf %33, %35 : vector<16x128xf32>
    %37 = vector.extract_strided_slice %36 {offsets = [0, 0], sizes = [16, 16], strides = [1, 1]} : vector<16x128xf32> to vector<16x16xf32>
    %38 = arith.truncf %37 : vector<16x16xf32> to vector<16x16xbf16>
    %39 = vector.extract_strided_slice %36 {offsets = [0, 32], sizes = [16, 16], strides = [1, 1]} : vector<16x128xf32> to vector<16x16xf32>
    %40 = arith.truncf %39 : vector<16x16xf32> to vector<16x16xbf16>
    %41 = vector.extract_strided_slice %36 {offsets = [0, 64], sizes = [16, 16], strides = [1, 1]} : vector<16x128xf32> to vector<16x16xf32>
    %42 = arith.truncf %41 : vector<16x16xf32> to vector<16x16xbf16>
    %cst_20 = arith.constant dense<0.000000e+00> : vector<16x16xf32>
    %43 = tpu.matmul %38, %40, %cst_20 {dimension_numbers = #tpu.dot_dimension_numbers<[1], [1], [0], [0], [0, 0, 1, 0], [], []>} : vector<16x16xbf16>, vector<16x16xbf16>, vector<16x16xf32> -> vector<16x16xf32>
    %44 = arith.addf %43, %5 : vector<16x16xf32>
    %cst_21 = arith.constant dense<0xFF800000> : vector<16xf32>
    %45 = vector.multi_reduction <maximumf>, %44, %cst_21 [1] : vector<16x16xf32> to vector<16xf32>
    %46 = vector.shape_cast %45 : vector<16xf32> to vector<16x1xf32>
    %47 = vector.broadcast %46 : vector<16x1xf32> to vector<16x16xf32>
    %48 = arith.subf %44, %47 : vector<16x16xf32>
    %49 = math.exp %48 : vector<16x16xf32>
    %cst_22 = arith.constant dense<0.000000e+00> : vector<16xf32>
    %50 = vector.multi_reduction <add>, %49, %cst_22 [1] : vector<16x16xf32> to vector<16xf32>
    %51 = vector.shape_cast %50 : vector<16xf32> to vector<16x1xf32>
    %52 = tpu.reciprocal %51 {approx = true} : vector<16x1xf32> -> vector<16x1xf32>
    %53 = vector.broadcast %52 : vector<16x1xf32> to vector<16x16xf32>
    %54 = arith.mulf %49, %53 : vector<16x16xf32>
    %55 = arith.truncf %54 : vector<16x16xf32> to vector<16x16xbf16>
    %cst_23 = arith.constant dense<0.000000e+00> : vector<16x16xf32>
    %56 = tpu.matmul %55, %42, %cst_23 {dimension_numbers = #tpu.dot_dimension_numbers<[1], [0], [0], [1], [0, 0, 1, 1], [], []>} : vector<16x16xbf16>, vector<16x16xbf16>, vector<16x16xf32> -> vector<16x16xf32>
    %57 = vector.extract_strided_slice %36 {offsets = [0, 16], sizes = [16, 16], strides = [1, 1]} : vector<16x128xf32> to vector<16x16xf32>
    %58 = arith.truncf %57 : vector<16x16xf32> to vector<16x16xbf16>
    %59 = vector.extract_strided_slice %36 {offsets = [0, 48], sizes = [16, 16], strides = [1, 1]} : vector<16x128xf32> to vector<16x16xf32>
    %60 = arith.truncf %59 : vector<16x16xf32> to vector<16x16xbf16>
    %61 = vector.extract_strided_slice %36 {offsets = [0, 80], sizes = [16, 16], strides = [1, 1]} : vector<16x128xf32> to vector<16x16xf32>
    %62 = arith.truncf %61 : vector<16x16xf32> to vector<16x16xbf16>
    %cst_24 = arith.constant dense<0.000000e+00> : vector<16x16xf32>
    %63 = tpu.matmul %58, %60, %cst_24 {dimension_numbers = #tpu.dot_dimension_numbers<[1], [1], [0], [0], [0, 0, 1, 0], [], []>} : vector<16x16xbf16>, vector<16x16xbf16>, vector<16x16xf32> -> vector<16x16xf32>
    %64 = arith.addf %63, %5 : vector<16x16xf32>
    %cst_25 = arith.constant dense<0xFF800000> : vector<16xf32>
    %65 = vector.multi_reduction <maximumf>, %64, %cst_25 [1] : vector<16x16xf32> to vector<16xf32>
    %66 = vector.shape_cast %65 : vector<16xf32> to vector<16x1xf32>
    %67 = vector.broadcast %66 : vector<16x1xf32> to vector<16x16xf32>
    %68 = arith.subf %64, %67 : vector<16x16xf32>
    %69 = math.exp %68 : vector<16x16xf32>
    %cst_26 = arith.constant dense<0.000000e+00> : vector<16xf32>
    %70 = vector.multi_reduction <add>, %69, %cst_26 [1] : vector<16x16xf32> to vector<16xf32>
    %71 = vector.shape_cast %70 : vector<16xf32> to vector<16x1xf32>
    %72 = tpu.reciprocal %71 {approx = true} : vector<16x1xf32> -> vector<16x1xf32>
    %73 = vector.broadcast %72 : vector<16x1xf32> to vector<16x16xf32>
    %74 = arith.mulf %69, %73 : vector<16x16xf32>
    %75 = arith.truncf %74 : vector<16x16xf32> to vector<16x16xbf16>
    %cst_27 = arith.constant dense<0.000000e+00> : vector<16x16xf32>
    %76 = tpu.matmul %75, %62, %cst_27 {dimension_numbers = #tpu.dot_dimension_numbers<[1], [0], [0], [1], [0, 0, 1, 1], [], []>} : vector<16x16xbf16>, vector<16x16xbf16>, vector<16x16xf32> -> vector<16x16xf32>
    %77 = tpu.concatenate %56, %76 in 1 : vector<16x16xf32>, vector<16x16xf32> -> vector<16x32xf32>
    %78 = arith.truncf %77 : vector<16x32xf32> to vector<16x32xbf16>
    %c0_28 = arith.constant 0 : index
    %c0_29 = arith.constant 0 : index
    %c0_30 = arith.constant 0 : index
    %79 = vector.load %arg5[%c0_28, %c0_29, %c0_30] : memref<2x32x32xbf16, #tpu.memory_space<vmem>>, vector<1x32x32xbf16>
    %80 = vector.shape_cast %79 : vector<1x32x32xbf16> to vector<32x32xbf16>
    %cst_31 = arith.constant dense<0.000000e+00> : vector<16x32xf32>
    %81 = tpu.matmul %78, %80, %cst_31 {dimension_numbers = #tpu.dot_dimension_numbers<[1], [0], [0], [1], [0, 0, 1, 1], [], []>} : vector<16x32xbf16>, vector<32x32xbf16>, vector<16x32xf32> -> vector<16x32xf32>
    %c10 = arith.constant 10 : index
    %c0_32 = arith.constant 0 : index
    %82 = vector.load %arg8[%c10, %c0_32] : memref<19x128xf32, #tpu.memory_space<vmem>>, vector<1x32xf32>
    %83 = vector.broadcast %82 : vector<1x32xf32> to vector<16x32xf32>
    %84 = arith.addf %81, %83 : vector<16x32xf32>
    %85 = arith.addf %4, %84 : vector<16x32xf32>
    %c4 = arith.constant 4 : index
    %c0_33 = arith.constant 0 : index
    %86 = vector.load %arg8[%c4, %c0_33] : memref<19x128xf32, #tpu.memory_space<vmem>>, vector<1x32xf32>
    %c6 = arith.constant 6 : index
    %c0_34 = arith.constant 0 : index
    %87 = vector.load %arg8[%c6, %c0_34] : memref<19x128xf32, #tpu.memory_space<vmem>>, vector<1x32xf32>
    %cst_35 = arith.constant dense<0.000000e+00> : vector<16xf32>
    %88 = vector.multi_reduction <add>, %85, %cst_35 [1] : vector<16x32xf32> to vector<16xf32>
    %89 = vector.shape_cast %88 : vector<16xf32> to vector<16x1xf32>
    %90 = arith.mulf %85, %85 : vector<16x32xf32>
    %cst_36 = arith.constant dense<0.000000e+00> : vector<16xf32>
    %91 = vector.multi_reduction <add>, %90, %cst_36 [1] : vector<16x32xf32> to vector<16xf32>
    %92 = vector.shape_cast %91 : vector<16xf32> to vector<16x1xf32>
    %cst_37 = arith.constant 3.125000e-02 : f32
    %93 = vector.broadcast %cst_37 : f32 to vector<16x1xf32>
    %94 = arith.mulf %89, %93 : vector<16x1xf32>
    %cst_38 = arith.constant 3.125000e-02 : f32
    %95 = vector.broadcast %cst_38 : f32 to vector<16x1xf32>
    %96 = arith.mulf %92, %95 : vector<16x1xf32>
    %97 = arith.mulf %94, %94 : vector<16x1xf32>
    %98 = arith.subf %96, %97 : vector<16x1xf32>
    %99 = vector.broadcast %94 : vector<16x1xf32> to vector<16x32xf32>
    %100 = arith.subf %85, %99 : vector<16x32xf32>
    %cst_39 = arith.constant 9.99999996E-13 : f32
    %101 = vector.broadcast %cst_39 : f32 to vector<16x1xf32>
    %102 = arith.addf %98, %101 : vector<16x1xf32>
    %103 = math.rsqrt %102 : vector<16x1xf32>
    %104 = vector.broadcast %103 : vector<16x1xf32> to vector<16x32xf32>
    %105 = arith.mulf %100, %104 : vector<16x32xf32>
    %106 = vector.broadcast %86 : vector<1x32xf32> to vector<16x32xf32>
    %107 = arith.mulf %105, %106 : vector<16x32xf32>
    %108 = vector.broadcast %87 : vector<1x32xf32> to vector<16x32xf32>
    %109 = arith.addf %107, %108 : vector<16x32xf32>
    %110 = arith.truncf %109 : vector<16x32xf32> to vector<16x32xbf16>
    %c0_40 = arith.constant 0 : index
    %c0_41 = arith.constant 0 : index
    %c0_42 = arith.constant 0 : index
    %111 = vector.load %arg6[%c0_40, %c0_41, %c0_42] : memref<2x32x64xbf16, #tpu.memory_space<vmem>>, vector<1x32x64xbf16>
    %112 = vector.shape_cast %111 : vector<1x32x64xbf16> to vector<32x64xbf16>
    %cst_43 = arith.constant dense<0.000000e+00> : vector<16x64xf32>
    %113 = tpu.matmul %110, %112, %cst_43 {dimension_numbers = #tpu.dot_dimension_numbers<[1], [0], [0], [1], [0, 0, 1, 1], [], []>} : vector<16x32xbf16>, vector<32x64xbf16>, vector<16x64xf32> -> vector<16x64xf32>
    %c12 = arith.constant 12 : index
    %c0_44 = arith.constant 0 : index
    %114 = vector.load %arg8[%c12, %c0_44] : memref<19x128xf32, #tpu.memory_space<vmem>>, vector<1x64xf32>
    %115 = vector.broadcast %114 : vector<1x64xf32> to vector<16x64xf32>
    %116 = arith.addf %113, %115 : vector<16x64xf32>
    %117 = arith.mulf %116, %116 : vector<16x64xf32>
    %118 = arith.mulf %116, %117 : vector<16x64xf32>
    %cst_45 = arith.constant 4.471500e-02 : f32
    %119 = vector.broadcast %cst_45 : f32 to vector<16x64xf32>
    %120 = arith.mulf %119, %118 : vector<16x64xf32>
    %121 = arith.addf %116, %120 : vector<16x64xf32>
    %cst_46 = arith.constant 0.797884583 : f32
    %122 = vector.broadcast %cst_46 : f32 to vector<16x64xf32>
    %123 = arith.mulf %122, %121 : vector<16x64xf32>
    %124 = math.tanh %123 : vector<16x64xf32>
    %cst_47 = arith.constant 1.000000e+00 : f32
    %125 = vector.broadcast %cst_47 : f32 to vector<16x64xf32>
    %126 = arith.addf %125, %124 : vector<16x64xf32>
    %cst_48 = arith.constant 5.000000e-01 : f32
    %127 = vector.broadcast %cst_48 : f32 to vector<16x64xf32>
    %128 = arith.mulf %127, %126 : vector<16x64xf32>
    %129 = arith.mulf %116, %128 : vector<16x64xf32>
    %130 = arith.truncf %129 : vector<16x64xf32> to vector<16x64xbf16>
    %c0_49 = arith.constant 0 : index
    %c0_50 = arith.constant 0 : index
    %c0_51 = arith.constant 0 : index
    %131 = vector.load %arg7[%c0_49, %c0_50, %c0_51] : memref<2x64x32xbf16, #tpu.memory_space<vmem>>, vector<1x64x32xbf16>
    %132 = vector.shape_cast %131 : vector<1x64x32xbf16> to vector<64x32xbf16>
    %cst_52 = arith.constant dense<0.000000e+00> : vector<16x32xf32>
    %133 = tpu.matmul %130, %132, %cst_52 {dimension_numbers = #tpu.dot_dimension_numbers<[1], [0], [0], [1], [0, 0, 1, 1], [], []>} : vector<16x64xbf16>, vector<64x32xbf16>, vector<16x32xf32> -> vector<16x32xf32>
    %c14 = arith.constant 14 : index
    %c0_53 = arith.constant 0 : index
    %134 = vector.load %arg8[%c14, %c0_53] : memref<19x128xf32, #tpu.memory_space<vmem>>, vector<1x32xf32>
    %135 = vector.broadcast %134 : vector<1x32xf32> to vector<16x32xf32>
    %136 = arith.addf %133, %135 : vector<16x32xf32>
    %137 = arith.addf %85, %136 : vector<16x32xf32>
    %c1 = arith.constant 1 : index
    %c0_54 = arith.constant 0 : index
    %138 = vector.load %arg8[%c1, %c0_54] : memref<19x128xf32, #tpu.memory_space<vmem>>, vector<1x32xf32>
    %c3 = arith.constant 3 : index
    %c0_55 = arith.constant 0 : index
    %139 = vector.load %arg8[%c3, %c0_55] : memref<19x128xf32, #tpu.memory_space<vmem>>, vector<1x32xf32>
    %cst_56 = arith.constant dense<0.000000e+00> : vector<16xf32>
    %140 = vector.multi_reduction <add>, %137, %cst_56 [1] : vector<16x32xf32> to vector<16xf32>
    %141 = vector.shape_cast %140 : vector<16xf32> to vector<16x1xf32>
    %142 = arith.mulf %137, %137 : vector<16x32xf32>
    %cst_57 = arith.constant dense<0.000000e+00> : vector<16xf32>
    %143 = vector.multi_reduction <add>, %142, %cst_57 [1] : vector<16x32xf32> to vector<16xf32>
    %144 = vector.shape_cast %143 : vector<16xf32> to vector<16x1xf32>
    %cst_58 = arith.constant 3.125000e-02 : f32
    %145 = vector.broadcast %cst_58 : f32 to vector<16x1xf32>
    %146 = arith.mulf %141, %145 : vector<16x1xf32>
    %cst_59 = arith.constant 3.125000e-02 : f32
    %147 = vector.broadcast %cst_59 : f32 to vector<16x1xf32>
    %148 = arith.mulf %144, %147 : vector<16x1xf32>
    %149 = arith.mulf %146, %146 : vector<16x1xf32>
    %150 = arith.subf %148, %149 : vector<16x1xf32>
    %151 = vector.broadcast %146 : vector<16x1xf32> to vector<16x32xf32>
    %152 = arith.subf %137, %151 : vector<16x32xf32>
    %cst_60 = arith.constant 9.99999996E-13 : f32
    %153 = vector.broadcast %cst_60 : f32 to vector<16x1xf32>
    %154 = arith.addf %150, %153 : vector<16x1xf32>
    %155 = math.rsqrt %154 : vector<16x1xf32>
    %156 = vector.broadcast %155 : vector<16x1xf32> to vector<16x32xf32>
    %157 = arith.mulf %152, %156 : vector<16x32xf32>
    %158 = vector.broadcast %138 : vector<1x32xf32> to vector<16x32xf32>
    %159 = arith.mulf %157, %158 : vector<16x32xf32>
    %160 = vector.broadcast %139 : vector<1x32xf32> to vector<16x32xf32>
    %161 = arith.addf %159, %160 : vector<16x32xf32>
    %162 = arith.truncf %161 : vector<16x32xf32> to vector<16x32xbf16>
    %c1_61 = arith.constant 1 : index
    %c0_62 = arith.constant 0 : index
    %c0_63 = arith.constant 0 : index
    %163 = vector.load %arg4[%c1_61, %c0_62, %c0_63] : memref<2x32x128xbf16, #tpu.memory_space<vmem>>, vector<1x32x128xbf16>
    %164 = vector.shape_cast %163 : vector<1x32x128xbf16> to vector<32x128xbf16>
    %cst_64 = arith.constant dense<0.000000e+00> : vector<16x128xf32>
    %165 = tpu.matmul %162, %164, %cst_64 {dimension_numbers = #tpu.dot_dimension_numbers<[1], [0], [0], [1], [0, 0, 1, 1], [], []>} : vector<16x32xbf16>, vector<32x128xbf16>, vector<16x128xf32> -> vector<16x128xf32>
    %c9 = arith.constant 9 : index
    %c0_65 = arith.constant 0 : index
    %166 = vector.load %arg8[%c9, %c0_65] : memref<19x128xf32, #tpu.memory_space<vmem>>, vector<1x128xf32>
    %167 = vector.broadcast %166 : vector<1x128xf32> to vector<16x128xf32>
    %168 = arith.addf %165, %167 : vector<16x128xf32>
    %169 = vector.extract_strided_slice %168 {offsets = [0, 0], sizes = [16, 16], strides = [1, 1]} : vector<16x128xf32> to vector<16x16xf32>
    %170 = arith.truncf %169 : vector<16x16xf32> to vector<16x16xbf16>
    %171 = vector.extract_strided_slice %168 {offsets = [0, 32], sizes = [16, 16], strides = [1, 1]} : vector<16x128xf32> to vector<16x16xf32>
    %172 = arith.truncf %171 : vector<16x16xf32> to vector<16x16xbf16>
    %173 = vector.extract_strided_slice %168 {offsets = [0, 64], sizes = [16, 16], strides = [1, 1]} : vector<16x128xf32> to vector<16x16xf32>
    %174 = arith.truncf %173 : vector<16x16xf32> to vector<16x16xbf16>
    %cst_66 = arith.constant dense<0.000000e+00> : vector<16x16xf32>
    %175 = tpu.matmul %170, %172, %cst_66 {dimension_numbers = #tpu.dot_dimension_numbers<[1], [1], [0], [0], [0, 0, 1, 0], [], []>} : vector<16x16xbf16>, vector<16x16xbf16>, vector<16x16xf32> -> vector<16x16xf32>
    %176 = arith.addf %175, %5 : vector<16x16xf32>
    %cst_67 = arith.constant dense<0xFF800000> : vector<16xf32>
    %177 = vector.multi_reduction <maximumf>, %176, %cst_67 [1] : vector<16x16xf32> to vector<16xf32>
    %178 = vector.shape_cast %177 : vector<16xf32> to vector<16x1xf32>
    %179 = vector.broadcast %178 : vector<16x1xf32> to vector<16x16xf32>
    %180 = arith.subf %176, %179 : vector<16x16xf32>
    %181 = math.exp %180 : vector<16x16xf32>
    %cst_68 = arith.constant dense<0.000000e+00> : vector<16xf32>
    %182 = vector.multi_reduction <add>, %181, %cst_68 [1] : vector<16x16xf32> to vector<16xf32>
    %183 = vector.shape_cast %182 : vector<16xf32> to vector<16x1xf32>
    %184 = tpu.reciprocal %183 {approx = true} : vector<16x1xf32> -> vector<16x1xf32>
    %185 = vector.broadcast %184 : vector<16x1xf32> to vector<16x16xf32>
    %186 = arith.mulf %181, %185 : vector<16x16xf32>
    %187 = arith.truncf %186 : vector<16x16xf32> to vector<16x16xbf16>
    %cst_69 = arith.constant dense<0.000000e+00> : vector<16x16xf32>
    %188 = tpu.matmul %187, %174, %cst_69 {dimension_numbers = #tpu.dot_dimension_numbers<[1], [0], [0], [1], [0, 0, 1, 1], [], []>} : vector<16x16xbf16>, vector<16x16xbf16>, vector<16x16xf32> -> vector<16x16xf32>
    %189 = vector.extract_strided_slice %168 {offsets = [0, 16], sizes = [16, 16], strides = [1, 1]} : vector<16x128xf32> to vector<16x16xf32>
    %190 = arith.truncf %189 : vector<16x16xf32> to vector<16x16xbf16>
    %191 = vector.extract_strided_slice %168 {offsets = [0, 48], sizes = [16, 16], strides = [1, 1]} : vector<16x128xf32> to vector<16x16xf32>
    %192 = arith.truncf %191 : vector<16x16xf32> to vector<16x16xbf16>
    %193 = vector.extract_strided_slice %168 {offsets = [0, 80], sizes = [16, 16], strides = [1, 1]} : vector<16x128xf32> to vector<16x16xf32>
    %194 = arith.truncf %193 : vector<16x16xf32> to vector<16x16xbf16>
    %cst_70 = arith.constant dense<0.000000e+00> : vector<16x16xf32>
    %195 = tpu.matmul %190, %192, %cst_70 {dimension_numbers = #tpu.dot_dimension_numbers<[1], [1], [0], [0], [0, 0, 1, 0], [], []>} : vector<16x16xbf16>, vector<16x16xbf16>, vector<16x16xf32> -> vector<16x16xf32>
    %196 = arith.addf %195, %5 : vector<16x16xf32>
    %cst_71 = arith.constant dense<0xFF800000> : vector<16xf32>
    %197 = vector.multi_reduction <maximumf>, %196, %cst_71 [1] : vector<16x16xf32> to vector<16xf32>
    %198 = vector.shape_cast %197 : vector<16xf32> to vector<16x1xf32>
    %199 = vector.broadcast %198 : vector<16x1xf32> to vector<16x16xf32>
    %200 = arith.subf %196, %199 : vector<16x16xf32>
    %201 = math.exp %200 : vector<16x16xf32>
    %cst_72 = arith.constant dense<0.000000e+00> : vector<16xf32>
    %202 = vector.multi_reduction <add>, %201, %cst_72 [1] : vector<16x16xf32> to vector<16xf32>
    %203 = vector.shape_cast %202 : vector<16xf32> to vector<16x1xf32>
    %204 = tpu.reciprocal %203 {approx = true} : vector<16x1xf32> -> vector<16x1xf32>
    %205 = vector.broadcast %204 : vector<16x1xf32> to vector<16x16xf32>
    %206 = arith.mulf %201, %205 : vector<16x16xf32>
    %207 = arith.truncf %206 : vector<16x16xf32> to vector<16x16xbf16>
    %cst_73 = arith.constant dense<0.000000e+00> : vector<16x16xf32>
    %208 = tpu.matmul %207, %194, %cst_73 {dimension_numbers = #tpu.dot_dimension_numbers<[1], [0], [0], [1], [0, 0, 1, 1], [], []>} : vector<16x16xbf16>, vector<16x16xbf16>, vector<16x16xf32> -> vector<16x16xf32>
    %209 = tpu.concatenate %188, %208 in 1 : vector<16x16xf32>, vector<16x16xf32> -> vector<16x32xf32>
    %210 = arith.truncf %209 : vector<16x32xf32> to vector<16x32xbf16>
    %c1_74 = arith.constant 1 : index
    %c0_75 = arith.constant 0 : index
    %c0_76 = arith.constant 0 : index
    %211 = vector.load %arg5[%c1_74, %c0_75, %c0_76] : memref<2x32x32xbf16, #tpu.memory_space<vmem>>, vector<1x32x32xbf16>
    %212 = vector.shape_cast %211 : vector<1x32x32xbf16> to vector<32x32xbf16>
    %cst_77 = arith.constant dense<0.000000e+00> : vector<16x32xf32>
    %213 = tpu.matmul %210, %212, %cst_77 {dimension_numbers = #tpu.dot_dimension_numbers<[1], [0], [0], [1], [0, 0, 1, 1], [], []>} : vector<16x32xbf16>, vector<32x32xbf16>, vector<16x32xf32> -> vector<16x32xf32>
    %c11 = arith.constant 11 : index
    %c0_78 = arith.constant 0 : index
    %214 = vector.load %arg8[%c11, %c0_78] : memref<19x128xf32, #tpu.memory_space<vmem>>, vector<1x32xf32>
    %215 = vector.broadcast %214 : vector<1x32xf32> to vector<16x32xf32>
    %216 = arith.addf %213, %215 : vector<16x32xf32>
    %217 = arith.addf %137, %216 : vector<16x32xf32>
    %c5 = arith.constant 5 : index
    %c0_79 = arith.constant 0 : index
    %218 = vector.load %arg8[%c5, %c0_79] : memref<19x128xf32, #tpu.memory_space<vmem>>, vector<1x32xf32>
    %c7 = arith.constant 7 : index
    %c0_80 = arith.constant 0 : index
    %219 = vector.load %arg8[%c7, %c0_80] : memref<19x128xf32, #tpu.memory_space<vmem>>, vector<1x32xf32>
    %cst_81 = arith.constant dense<0.000000e+00> : vector<16xf32>
    %220 = vector.multi_reduction <add>, %217, %cst_81 [1] : vector<16x32xf32> to vector<16xf32>
    %221 = vector.shape_cast %220 : vector<16xf32> to vector<16x1xf32>
    %222 = arith.mulf %217, %217 : vector<16x32xf32>
    %cst_82 = arith.constant dense<0.000000e+00> : vector<16xf32>
    %223 = vector.multi_reduction <add>, %222, %cst_82 [1] : vector<16x32xf32> to vector<16xf32>
    %224 = vector.shape_cast %223 : vector<16xf32> to vector<16x1xf32>
    %cst_83 = arith.constant 3.125000e-02 : f32
    %225 = vector.broadcast %cst_83 : f32 to vector<16x1xf32>
    %226 = arith.mulf %221, %225 : vector<16x1xf32>
    %cst_84 = arith.constant 3.125000e-02 : f32
    %227 = vector.broadcast %cst_84 : f32 to vector<16x1xf32>
    %228 = arith.mulf %224, %227 : vector<16x1xf32>
    %229 = arith.mulf %226, %226 : vector<16x1xf32>
    %230 = arith.subf %228, %229 : vector<16x1xf32>
    %231 = vector.broadcast %226 : vector<16x1xf32> to vector<16x32xf32>
    %232 = arith.subf %217, %231 : vector<16x32xf32>
    %cst_85 = arith.constant 9.99999996E-13 : f32
    %233 = vector.broadcast %cst_85 : f32 to vector<16x1xf32>
    %234 = arith.addf %230, %233 : vector<16x1xf32>
    %235 = math.rsqrt %234 : vector<16x1xf32>
    %236 = vector.broadcast %235 : vector<16x1xf32> to vector<16x32xf32>
    %237 = arith.mulf %232, %236 : vector<16x32xf32>
    %238 = vector.broadcast %218 : vector<1x32xf32> to vector<16x32xf32>
    %239 = arith.mulf %237, %238 : vector<16x32xf32>
    %240 = vector.broadcast %219 : vector<1x32xf32> to vector<16x32xf32>
    %241 = arith.addf %239, %240 : vector<16x32xf32>
    %242 = arith.truncf %241 : vector<16x32xf32> to vector<16x32xbf16>
    %c1_86 = arith.constant 1 : index
    %c0_87 = arith.constant 0 : index
    %c0_88 = arith.constant 0 : index
    %243 = vector.load %arg6[%c1_86, %c0_87, %c0_88] : memref<2x32x64xbf16, #tpu.memory_space<vmem>>, vector<1x32x64xbf16>
    %244 = vector.shape_cast %243 : vector<1x32x64xbf16> to vector<32x64xbf16>
    %cst_89 = arith.constant dense<0.000000e+00> : vector<16x64xf32>
    %245 = tpu.matmul %242, %244, %cst_89 {dimension_numbers = #tpu.dot_dimension_numbers<[1], [0], [0], [1], [0, 0, 1, 1], [], []>} : vector<16x32xbf16>, vector<32x64xbf16>, vector<16x64xf32> -> vector<16x64xf32>
    %c13 = arith.constant 13 : index
    %c0_90 = arith.constant 0 : index
    %246 = vector.load %arg8[%c13, %c0_90] : memref<19x128xf32, #tpu.memory_space<vmem>>, vector<1x64xf32>
    %247 = vector.broadcast %246 : vector<1x64xf32> to vector<16x64xf32>
    %248 = arith.addf %245, %247 : vector<16x64xf32>
    %249 = arith.mulf %248, %248 : vector<16x64xf32>
    %250 = arith.mulf %248, %249 : vector<16x64xf32>
    %cst_91 = arith.constant 4.471500e-02 : f32
    %251 = vector.broadcast %cst_91 : f32 to vector<16x64xf32>
    %252 = arith.mulf %251, %250 : vector<16x64xf32>
    %253 = arith.addf %248, %252 : vector<16x64xf32>
    %cst_92 = arith.constant 0.797884583 : f32
    %254 = vector.broadcast %cst_92 : f32 to vector<16x64xf32>
    %255 = arith.mulf %254, %253 : vector<16x64xf32>
    %256 = math.tanh %255 : vector<16x64xf32>
    %cst_93 = arith.constant 1.000000e+00 : f32
    %257 = vector.broadcast %cst_93 : f32 to vector<16x64xf32>
    %258 = arith.addf %257, %256 : vector<16x64xf32>
    %cst_94 = arith.constant 5.000000e-01 : f32
    %259 = vector.broadcast %cst_94 : f32 to vector<16x64xf32>
    %260 = arith.mulf %259, %258 : vector<16x64xf32>
    %261 = arith.mulf %248, %260 : vector<16x64xf32>
    %262 = arith.truncf %261 : vector<16x64xf32> to vector<16x64xbf16>
    %c1_95 = arith.constant 1 : index
    %c0_96 = arith.constant 0 : index
    %c0_97 = arith.constant 0 : index
    %263 = vector.load %arg7[%c1_95, %c0_96, %c0_97] : memref<2x64x32xbf16, #tpu.memory_space<vmem>>, vector<1x64x32xbf16>
    %264 = vector.shape_cast %263 : vector<1x64x32xbf16> to vector<64x32xbf16>
    %cst_98 = arith.constant dense<0.000000e+00> : vector<16x32xf32>
    %265 = tpu.matmul %262, %264, %cst_98 {dimension_numbers = #tpu.dot_dimension_numbers<[1], [0], [0], [1], [0, 0, 1, 1], [], []>} : vector<16x64xbf16>, vector<64x32xbf16>, vector<16x32xf32> -> vector<16x32xf32>
    %c15 = arith.constant 15 : index
    %c0_99 = arith.constant 0 : index
    %266 = vector.load %arg8[%c15, %c0_99] : memref<19x128xf32, #tpu.memory_space<vmem>>, vector<1x32xf32>
    %267 = vector.broadcast %266 : vector<1x32xf32> to vector<16x32xf32>
    %268 = arith.addf %265, %267 : vector<16x32xf32>
    %269 = arith.addf %217, %268 : vector<16x32xf32>
    %c16 = arith.constant 16 : index
    %c0_100 = arith.constant 0 : index
    %270 = vector.load %arg8[%c16, %c0_100] : memref<19x128xf32, #tpu.memory_space<vmem>>, vector<1x32xf32>
    %c17 = arith.constant 17 : index
    %c0_101 = arith.constant 0 : index
    %271 = vector.load %arg8[%c17, %c0_101] : memref<19x128xf32, #tpu.memory_space<vmem>>, vector<1x32xf32>
    %cst_102 = arith.constant dense<0.000000e+00> : vector<16xf32>
    %272 = vector.multi_reduction <add>, %269, %cst_102 [1] : vector<16x32xf32> to vector<16xf32>
    %273 = vector.shape_cast %272 : vector<16xf32> to vector<16x1xf32>
    %274 = arith.mulf %269, %269 : vector<16x32xf32>
    %cst_103 = arith.constant dense<0.000000e+00> : vector<16xf32>
    %275 = vector.multi_reduction <add>, %274, %cst_103 [1] : vector<16x32xf32> to vector<16xf32>
    %276 = vector.shape_cast %275 : vector<16xf32> to vector<16x1xf32>
    %cst_104 = arith.constant 3.125000e-02 : f32
    %277 = vector.broadcast %cst_104 : f32 to vector<16x1xf32>
    %278 = arith.mulf %273, %277 : vector<16x1xf32>
    %cst_105 = arith.constant 3.125000e-02 : f32
    %279 = vector.broadcast %cst_105 : f32 to vector<16x1xf32>
    %280 = arith.mulf %276, %279 : vector<16x1xf32>
    %281 = arith.mulf %278, %278 : vector<16x1xf32>
    %282 = arith.subf %280, %281 : vector<16x1xf32>
    %283 = vector.broadcast %278 : vector<16x1xf32> to vector<16x32xf32>
    %284 = arith.subf %269, %283 : vector<16x32xf32>
    %cst_106 = arith.constant 9.99999996E-13 : f32
    %285 = vector.broadcast %cst_106 : f32 to vector<16x1xf32>
    %286 = arith.addf %282, %285 : vector<16x1xf32>
    %287 = math.rsqrt %286 : vector<16x1xf32>
    %288 = vector.broadcast %287 : vector<16x1xf32> to vector<16x32xf32>
    %289 = arith.mulf %284, %288 : vector<16x32xf32>
    %290 = vector.broadcast %270 : vector<1x32xf32> to vector<16x32xf32>
    %291 = arith.mulf %289, %290 : vector<16x32xf32>
    %292 = vector.broadcast %271 : vector<1x32xf32> to vector<16x32xf32>
    %293 = arith.addf %291, %292 : vector<16x32xf32>
    %294 = arith.truncf %293 : vector<16x32xf32> to vector<16x32xbf16>
    %c0_107 = arith.constant 0 : index
    %c0_108 = arith.constant 0 : index
    %295 = vector.load %arg9[%c0_107, %c0_108] : memref<32x128xbf16, #tpu.memory_space<vmem>>, vector<32x128xbf16>
    %cst_109 = arith.constant dense<0.000000e+00> : vector<16x128xf32>
    %296 = tpu.matmul %294, %295, %cst_109 {dimension_numbers = #tpu.dot_dimension_numbers<[1], [0], [0], [1], [0, 0, 1, 1], [], []>} : vector<16x32xbf16>, vector<32x128xbf16>, vector<16x128xf32> -> vector<16x128xf32>
    %c18 = arith.constant 18 : index
    %c0_110 = arith.constant 0 : index
    %297 = vector.load %arg8[%c18, %c0_110] : memref<19x128xf32, #tpu.memory_space<vmem>>, vector<1x128xf32>
    %298 = vector.broadcast %297 : vector<1x128xf32> to vector<16x128xf32>
    %299 = arith.addf %296, %298 : vector<16x128xf32>
    %c0_111 = arith.constant 0 : index
    %c0_112 = arith.constant 0 : index
    %300 = vector.load %arg10[%c0_111, %c0_112] : memref<16x128xf32, #tpu.memory_space<vmem>>, vector<16x128xf32>
    tpu.vector_store %arg10[%c0_111, %c0_112], %299 {strides = array<i32>} : memref<16x128xf32, #tpu.memory_space<vmem>>, vector<16x128xf32>,
    return
  }
}

</mosaic_0001>

<llo_original>
// kernel: tpu_custom_call.1
$region0: #{tpu_custom_call.1}
  #allocation0 [shape = 'u32[]', space=smem, size = 0x4, offset = 0x4, fixed_abs, tag = 'smem constant byte address 0x4 - core index']
  #allocation1 [shape = 'u32[144,128]{1,0:T(1,128)}', space=vmem, size = 0x12000, scoped, tag = 'internal scratch']
  %s0 = inlined_call_operand.vmem [shape: bf16[16,256], index: 0, kind: input, shape index: {}]
  %s1 = inlined_call_operand.vmem [shape: bf16[256,32], index: 1, kind: input, shape index: {}]
  %s2 = inlined_call_operand.vmem [shape: f32[16,32], index: 2, kind: input, shape index: {}]
  %s3 = inlined_call_operand.vmem [shape: f32[16,16], index: 3, kind: input, shape index: {}]
  %s4 = inlined_call_operand.vmem [shape: bf16[2,32,128], index: 4, kind: input, shape index: {}]
  %s5 = inlined_call_operand.vmem [shape: bf16[2,32,32], index: 5, kind: input, shape index: {}]
  %s6 = inlined_call_operand.vmem [shape: bf16[2,32,64], index: 6, kind: input, shape index: {}]
  %s7 = inlined_call_operand.vmem [shape: bf16[2,64,32], index: 7, kind: input, shape index: {}]
  %s8 = inlined_call_operand.vmem [shape: f32[19,128], index: 8, kind: input, shape index: {}]
  %s9 = inlined_call_operand.vmem [shape: bf16[32,128], index: 9, kind: input, shape index: {}]
  %s10 = inlined_call_operand.hbm [shape: f32[16,128], index: 10, kind: output, shape index: {}]
  %s11 = sld [smem:[#allocation0]]
  $region50: #{tpu_custom_call.1} parent=0
    _
  %s13 = ssub.s32 1, %s11
  %s14 = scalar_select 0, %s13, %s11
  $region1: #{tpu_custom_call.1} parent=0
    #allocation2 [shape = 'u8[8192]{0}', space=vmem, size = 0x2000, scoped, tag = 'output window, operand 0, single buffered']
    #allocation3 [shape = 's32[1]{0}', space=sflag, size = 0x4, scoped, tag = 'scoped memory for tpu_custom_call.1']
    %15 = vsyncpa [#allocation3], 0
    // Predicated region
    $region2: #{tpu_custom_call.1} parent=1 // pred_check
      _
    $region3: #{tpu_custom_call.1} parent=1 // pred_check_branch
      %17 = sbr.rel (0) target = $region5
    $region4: #{tpu_custom_call.1} parent=1 // pred_region
      _
    $region5: #{tpu_custom_call.1} parent=1 // pred_fallthru
      _
    // Predicated region
    $region6: #{tpu_custom_call.1} parent=1 // pred_check
      _
    $region7: #{tpu_custom_call.1} parent=1 // pred_check_branch
      %19 = sbr.rel (0) target = $region9
    $region8: #{tpu_custom_call.1} parent=1 // pred_region
      _
    $region9: #{tpu_custom_call.1} parent=1 // pred_fallthru
      _
    // Predicated region
    $region10: #{tpu_custom_call.1} parent=1 // pred_check
      _
    $region11: #{tpu_custom_call.1} parent=1 // pred_check_branch
      %21 = sbr.rel (0) target = $region13
    $region12: #{tpu_custom_call.1} parent=1 // pred_region
      _
    $region13: #{tpu_custom_call.1} parent=1 // pred_fallthru
      _
    // Predicated region
    $region14: #{tpu_custom_call.1} parent=1 // pred_check
      _
    $region15: #{tpu_custom_call.1} parent=1 // pred_check_branch
      %23 = sbr.rel (0) target = $region17
    $region16: #{tpu_custom_call.1} parent=1 // pred_region
      _
    $region17: #{tpu_custom_call.1} parent=1 // pred_fallthru
      _
    // Predicated region
    $region18: #{tpu_custom_call.1} parent=1 // pred_check
      _
    $region19: #{tpu_custom_call.1} parent=1 // pred_check_branch
      %25 = sbr.rel (0) target = $region21
    $region20: #{tpu_custom_call.1} parent=1 // pred_region
      _
    $region21: #{tpu_custom_call.1} parent=1 // pred_fallthru
      _
    // Predicated region
    $region22: #{tpu_custom_call.1} parent=1 // pred_check
      _
    $region23: #{tpu_custom_call.1} parent=1 // pred_check_branch
      %27 = sbr.rel (0) target = $region25
    $region24: #{tpu_custom_call.1} parent=1 // pred_region
      _
    $region25: #{tpu_custom_call.1} parent=1 // pred_fallthru
      _
    // Predicated region
    $region26: #{tpu_custom_call.1} parent=1 // pred_check
      _
    $region27: #{tpu_custom_call.1} parent=1 // pred_check_branch
      %29 = sbr.rel (0) target = $region29
    $region28: #{tpu_custom_call.1} parent=1 // pred_region
      _
    $region29: #{tpu_custom_call.1} parent=1 // pred_fallthru
      _
    // Predicated region
    $region30: #{tpu_custom_call.1} parent=1 // pred_check
      _
    $region31: #{tpu_custom_call.1} parent=1 // pred_check_branch
      %31 = sbr.rel (0) target = $region33
    $region32: #{tpu_custom_call.1} parent=1 // pred_region
      _
    $region33: #{tpu_custom_call.1} parent=1 // pred_fallthru
      _
    // Predicated region
    $region34: #{tpu_custom_call.1} parent=1 // pred_check
      _
    $region35: #{tpu_custom_call.1} parent=1 // pred_check_branch
      %33 = sbr.rel (0) target = $region37
    $region36: #{tpu_custom_call.1} parent=1 // pred_region
      _
    $region37: #{tpu_custom_call.1} parent=1 // pred_fallthru
      _
    // Predicated region
    $region38: #{tpu_custom_call.1} parent=1 // pred_check
      _
    $region39: #{tpu_custom_call.1} parent=1 // pred_check_branch
      %35 = sbr.rel (0) target = $region41
    $region40: #{tpu_custom_call.1} parent=1 // pred_region
      _
    $region41: #{tpu_custom_call.1} parent=1 // pred_fallthru
      _
    %v37 = vld [vmem:[%s2] sm:$0xff]
    %v38 = vld [vmem:[%s2 + $0x8] sm:$0xff]
    %v39 = vld [vmem:[%s0] sm:$0xff]
    %v40 = vld [vmem:[%s0 + $0x8] sm:$0xff]
    %v41 = vld [vmem:[%s1] sm:$0xf]
    %v42 = vld [vmem:[%s1 + $0x4] sm:$0xf]
    %v43 = vld [vmem:[%s1 + $0x8] sm:$0xf]
    %v44 = vld [vmem:[%s1 + $0xc] sm:$0xf]
    %v45 = vld [vmem:[%s1 + $0x10] sm:$0xf]
    %v46 = vld [vmem:[%s1 + $0x14] sm:$0xf]
    %v47 = vld [vmem:[%s1 + $0x18] sm:$0xf]
    %v48 = vld [vmem:[%s1 + $0x1c] sm:$0xf]
    %v49 = vld [vmem:[%s1 + $0x20] sm:$0xf]
    %v50 = vld [vmem:[%s1 + $0x24] sm:$0xf]
    %v51 = vld [vmem:[%s1 + $0x28] sm:$0xf]
    %v52 = vld [vmem:[%s1 + $0x2c] sm:$0xf]
    %v53 = vld [vmem:[%s1 + $0x30] sm:$0xf]
    %v54 = vld [vmem:[%s1 + $0x34] sm:$0xf]
    %v55 = vld [vmem:[%s1 + $0x38] sm:$0xf]
    %v56 = vld [vmem:[%s1 + $0x3c] sm:$0xf]
    %v57 = vld [vmem:[%s1 + $0x40] sm:$0xf]
    %v58 = vld [vmem:[%s1 + $0x44] sm:$0xf]
    %v59 = vld [vmem:[%s1 + $0x48] sm:$0xf]
    %v60 = vld [vmem:[%s1 + $0x4c] sm:$0xf]
    %v61 = vld [vmem:[%s1 + $0x50] sm:$0xf]
    %v62 = vld [vmem:[%s1 + $0x54] sm:$0xf]
    %v63 = vld [vmem:[%s1 + $0x58] sm:$0xf]
    %v64 = vld [vmem:[%s1 + $0x5c] sm:$0xf]
    %v65 = vld [vmem:[%s1 + $0x60] sm:$0xf]
    %v66 = vld [vmem:[%s1 + $0x64] sm:$0xf]
    %v67 = vld [vmem:[%s1 + $0x68] sm:$0xf]
    %v68 = vld [vmem:[%s1 + $0x6c] sm:$0xf]
    %v69 = vld [vmem:[%s1 + $0x70] sm:$0xf]
    %v70 = vld [vmem:[%s1 + $0x74] sm:$0xf]
    %v71 = vld [vmem:[%s1 + $0x78] sm:$0xf]
    %v72 = vld [vmem:[%s1 + $0x7c] sm:$0xf]
    %v75 = vunpack.c.l.b16 %v39
    %v76 = vunpack.c.h.b16 %v39
    %v77 = vunpack.c.l.b16 %v40
    %v78 = vunpack.c.h.b16 %v40
    %v79 = vpack.c.b16 %v77, %v75
    %v80 = vpack.c.b16 %v78, %v76
    %v115 = vunpack.c.l.b16 %v41
    %v116 = vunpack.c.l.b16 %v42
    %v117 = vunpack.c.l.b16 %v43
    %v118 = vunpack.c.l.b16 %v44
    %v119 = vunpack.c.l.b16 %v45
    %v120 = vunpack.c.l.b16 %v46
    %v121 = vunpack.c.l.b16 %v47
    %v122 = vunpack.c.l.b16 %v48
    %v123 = vunpack.c.l.b16 %v49
    %v124 = vunpack.c.l.b16 %v50
    %v125 = vunpack.c.l.b16 %v51
    %v126 = vunpack.c.l.b16 %v52
    %v127 = vunpack.c.l.b16 %v53
    %v128 = vunpack.c.l.b16 %v54
    %v129 = vunpack.c.l.b16 %v55
    %v130 = vunpack.c.l.b16 %v56
    %v131 = vunpack.c.l.b16 %v57
    %v132 = vunpack.c.l.b16 %v58
    %v133 = vunpack.c.l.b16 %v59
    %v134 = vunpack.c.l.b16 %v60
    %v135 = vunpack.c.l.b16 %v61
    %v136 = vunpack.c.l.b16 %v62
    %v137 = vunpack.c.l.b16 %v63
    %v138 = vunpack.c.l.b16 %v64
    %v139 = vunpack.c.l.b16 %v65
    %v140 = vunpack.c.l.b16 %v66
    %v141 = vunpack.c.l.b16 %v67
    %v142 = vunpack.c.l.b16 %v68
    %v143 = vunpack.c.l.b16 %v69
    %v144 = vunpack.c.l.b16 %v70
    %v145 = vunpack.c.l.b16 %v71
    %v146 = vunpack.c.l.b16 %v72
    %v147 = vpack.c.b16 %v116, %v115
    %v148 = vpack.c.b16 %v118, %v117
    %v149 = vpack.c.b16 %v120, %v119
    %v150 = vpack.c.b16 %v122, %v121
    %v151 = vpack.c.b16 %v124, %v123
    %v152 = vpack.c.b16 %v126, %v125
    %v153 = vpack.c.b16 %v128, %v127
    %v154 = vpack.c.b16 %v130, %v129
    %v155 = vpack.c.b16 %v132, %v131
    %v156 = vpack.c.b16 %v134, %v133
    %v157 = vpack.c.b16 %v136, %v135
    %v158 = vpack.c.b16 %v138, %v137
    %v159 = vpack.c.b16 %v140, %v139
    %v160 = vpack.c.b16 %v142, %v141
    %v161 = vpack.c.b16 %v144, %v143
    %v162 = vpack.c.b16 %v146, %v145
    %179 = vmatprep.subr.bf16.mxu0 0
    %180 = vmatpush1.bf16.msra.mxu0 %v154
    %181 = vmatprep.subr.bf16.mxu0 0
    %182 = vmatpush1.bf16.msra.mxu0 %v153
    %183 = vmatprep.subr.bf16.mxu0 0
    %184 = vmatpush1.bf16.msra.mxu0 %v152
    %185 = vmatprep.subr.bf16.mxu0 0
    %186 = vmatpush1.bf16.msra.mxu0 %v151
    %187 = vmatprep.subr.bf16.mxu0 0
    %188 = vmatpush1.bf16.msra.mxu0 %v150
    %189 = vmatprep.subr.bf16.mxu0 0
    %190 = vmatpush1.bf16.msra.mxu0 %v149
    %191 = vmatprep.subr.bf16.mxu0 0
    %192 = vmatpush1.bf16.msra.mxu0 %v148
    %193 = vmatprep.subr.bf16.mxu0 0
    %194 = vmatpush1.bf16.msra.mxu0 %v147
    %195 = vmatprep.subr.bf16.mxu0 0
    %196 = vmatpush2.bf16.msra.mxu0 %v162
    %197 = vmatprep.subr.bf16.mxu0 0
    %198 = vmatpush2.bf16.msra.mxu0 %v161
    %199 = vmatprep.subr.bf16.mxu0 0
    %200 = vmatpush2.bf16.msra.mxu0 %v160
    %201 = vmatprep.subr.bf16.mxu0 0
    %202 = vmatpush2.bf16.msra.mxu0 %v159
    %203 = vmatprep.subr.bf16.mxu0 0
    %204 = vmatpush2.bf16.msra.mxu0 %v158
    %205 = vmatprep.subr.bf16.mxu0 0
    %206 = vmatpush2.bf16.msra.mxu0 %v157
    %207 = vmatprep.subr.bf16.mxu0 0
    %208 = vmatpush2.bf16.msra.mxu0 %v156
    %209 = vmatprep.subr.bf16.mxu0 0
    %210 = vmatpush2.bf16.msra.mxu0 %v155
    %211 = vmatprep.mubr.bf16.mxu0 %v80
    %212 = vmatmul.mubr.bf16.gmra.mxu0 %v79
    %v213 = vpop.f32.mrf.mxu0
    %v214 = vadd.f32 0.0, %v213
    %v215 = vpop.f32.mrf.mxu0
    %v216 = vpop.f32.mrf.mxu0
    %v217 = vadd.f32 0.0, %v216
    %v218 = vpop.f32.mrf.mxu0
    %219 = vdwg.mxu0
    %v220 = vadd.f32 %v37, %v214
    %v221 = vadd.f32 %v38, %v217
    %v222 = vld [vmem:[%s3] sm:$0xff]
    %v223 = vld [vmem:[%s3 + $0x8] sm:$0xff]
    %v224 = vld [vmem:[%s8] sm:$0x1]
    %v225 = vld [vmem:[%s8 + $0x2] sm:$0x1]
    %vm226 = vcmask 261120
    %v227 = vsel %vm226, %v220, 0.0
    %228 = vadd.xlane.f32.xlu0 %v227
    %v229 = vpop.xlane.xlu0 %228
    %v230 = vsel %vm226, %v221, 0.0
    %231 = vadd.xlane.f32.xlu0 %v230
    %v232 = vpop.xlane.xlu0 %231
    %v233 = vmul.f32 %v220, %v220
    %v234 = vmul.f32 %v221, %v221
    %v235 = vsel %vm226, %v233, 0.0
    %236 = vadd.xlane.f32.xlu0 %v235
    %v237 = vpop.xlane.xlu0 %236
    %v238 = vsel %vm226, %v234, 0.0
    %239 = vadd.xlane.f32.xlu0 %v238
    %v240 = vpop.xlane.xlu0 %239
    %v241 = vmul.f32 %v229, 0.03125
    %v242 = vmul.f32 %v232, 0.03125
    %v243 = vmul.f32 %v237, 0.03125
    %v244 = vmul.f32 %v240, 0.03125
    %v245 = vmul.f32 %v241, %v241
    %v246 = vmul.f32 %v242, %v242
    %v247 = vsub.f32 %v243, %v245
    %v248 = vsub.f32 %v244, %v246
    %v249 = vsub.f32 %v220, %v241
    %v250 = vsub.f32 %v221, %v242
    %v251 = vadd.f32 %v247, 1e-12
    %v252 = vadd.f32 %v248, 1e-12
    %v253 = vrsqrt.pop %v251
    %v254 = vrsqrt.pop %v252
    %v255 = vmul.f32 %v249, %v253
    %v256 = vmul.f32 %v250, %v254
    %v257 = vlaneseq
    %v258 = vshrl.u32 %v257, 7
    %v259 = vsub.s32 0, %v258
    %v260 = vrot.slane %v224, %v259
    %v261 = vmul.f32 %v255, %v260
    %v262 = vmul.f32 %v256, %v260
    %v263 = vlaneseq
    %v264 = vshrl.u32 %v263, 7
    %v265 = vsub.s32 0, %v264
    %v266 = vrot.slane %v225, %v265
    %v267 = vadd.f32 %v261, %v266
    %v268 = vadd.f32 %v262, %v266
    %v269 = vpack.c.bf16 %v268, %v267
    %v270 = vld [vmem:[%s4] sm:$0xf]
    %v271 = vld [vmem:[%s4 + $0x4] sm:$0xf]
    %v272 = vld [vmem:[%s4 + $0x8] sm:$0xf]
    %v273 = vld [vmem:[%s4 + $0xc] sm:$0xf]
    %v274 = vld [vmem:[%s8 + $0x8] sm:$0x1]
    %v275 = vlaneseq
    %v276 = vshrl.u32 %v275, 7
    %v277 = vsub.s32 0, %v276
    %v278 = vrot.slane %v274, %v277
    %v283 = vunpack.c.l.b16 %v270
    %v284 = vunpack.c.l.b16 %v271
    %v285 = vunpack.c.l.b16 %v272
    %v286 = vunpack.c.l.b16 %v273
    %v287 = vpack.c.b16 %v284, %v283
    %v288 = vpack.c.b16 %v286, %v285
    %v292 = vsel %vm226, %v269, 0
    %294 = vmatprep.subr.bf16.mxu0 0
    %295 = vmatpush1.bf16.msra.mxu0 0
    %296 = vmatprep.subr.bf16.mxu0 0
    %297 = vmatpush1.bf16.msra.mxu0 0
    %298 = vmatprep.subr.bf16.mxu0 0
    %299 = vmatpush1.bf16.msra.mxu0 0
    %300 = vmatprep.subr.bf16.mxu0 0
    %301 = vmatpush1.bf16.msra.mxu0 0
    %302 = vmatprep.subr.bf16.mxu0 0
    %303 = vmatpush1.bf16.msra.mxu0 0
    %304 = vmatprep.subr.bf16.mxu0 0
    %305 = vmatpush1.bf16.msra.mxu0 0
    %306 = vmatprep.subr.bf16.mxu0 0
    %307 = vmatpush1.bf16.msra.mxu0 %v288
    %308 = vmatprep.subr.bf16.mxu0 0
    %309 = vmatpush1.bf16.msra.mxu0 %v287
    %310 = vmatprep.subr.bf16.mxu0 0
    %311 = vmatpush2.bf16.msra.mxu0 0
    %312 = vmatprep.subr.bf16.mxu0 0
    %313 = vmatpush2.bf16.msra.mxu0 0
    %314 = vmatprep.subr.bf16.mxu0 0
    %315 = vmatpush2.bf16.msra.mxu0 0
    %316 = vmatprep.subr.bf16.mxu0 0
    %317 = vmatpush2.bf16.msra.mxu0 0
    %318 = vmatprep.subr.bf16.mxu0 0
    %319 = vmatpush2.bf16.msra.mxu0 0
    %320 = vmatprep.subr.bf16.mxu0 0
    %321 = vmatpush2.bf16.msra.mxu0 0
    %322 = vmatprep.subr.bf16.mxu0 0
    %323 = vmatpush2.bf16.msra.mxu0 0
    %324 = vmatprep.subr.bf16.mxu0 0
    %325 = vmatpush2.bf16.msra.mxu0 0
    %326 = vmatprep.mubr.bf16.mxu0 0
    %327 = vmatmul.mubr.bf16.gmra.mxu0 %v292
    %v328 = vpop.f32.mrf.mxu0
    %v329 = vadd.f32 %v278, %v328
    %v330 = vpop.f32.mrf.mxu0
    %v331 = vpop.f32.mrf.mxu0
    %v332 = vadd.f32 %v278, %v331
    %v333 = vpop.f32.mrf.mxu0
    %334 = vdwg.mxu0
    %v335 = vpack.c.bf16 %v332, %v329
    %337 = vrot.lane.b32.xlu0 %v335, 96
    %v338 = vpop.permute.xlu0 %337
    %vm339 = vcmask 130048
    %v341 = vsel %vm339, %v335, 0
    %v344 = vsel %vm339, %v338, 0
    %346 = vmatprep.subr.bf16.mxu0 0
    %347 = vmatpush1.bf16.xpose.msra.mxu0 0
    %348 = vmatprep.subr.bf16.mxu0 0
    %349 = vmatpush1.bf16.xpose.msra.mxu0 0
    %350 = vmatprep.subr.bf16.mxu0 0
    %351 = vmatpush1.bf16.xpose.msra.mxu0 0
    %352 = vmatprep.subr.bf16.mxu0 0
    %353 = vmatpush1.bf16.xpose.msra.mxu0 0
    %354 = vmatprep.subr.bf16.mxu0 0
    %355 = vmatpush1.bf16.xpose.msra.mxu0 0
    %356 = vmatprep.subr.bf16.mxu0 0
    %357 = vmatpush1.bf16.xpose.msra.mxu0 0
    %358 = vmatprep.subr.bf16.mxu0 0
    %359 = vmatpush1.bf16.xpose.msra.mxu0 0
    %360 = vmatprep.subr.bf16.mxu0 0
    %361 = vmatpush1.bf16.xpose.msra.mxu0 %v344
    %362 = vmatprep.subr.bf16.mxu0 0
    %363 = vmatpush2.bf16.xpose.msra.mxu0 0
    %364 = vmatprep.subr.bf16.mxu0 0
    %365 = vmatpush2.bf16.xpose.msra.mxu0 0
    %366 = vmatprep.subr.bf16.mxu0 0
    %367 = vmatpush2.bf16.xpose.msra.mxu0 0
    %368 = vmatprep.subr.bf16.mxu0 0
    %369 = vmatpush2.bf16.xpose.msra.mxu0 0
    %370 = vmatprep.subr.bf16.mxu0 0
    %371 = vmatpush2.bf16.xpose.msra.mxu0 0
    %372 = vmatprep.subr.bf16.mxu0 0
    %373 = vmatpush2.bf16.xpose.msra.mxu0 0
    %374 = vmatprep.subr.bf16.mxu0 0
    %375 = vmatpush2.bf16.xpose.msra.mxu0 0
    %376 = vmatprep.subr.bf16.mxu0 0
    %377 = vmatpush2.bf16.xpose.msra.mxu0 0
    %378 = vmatprep.mubr.bf16.mxu0 0
    %379 = vmatmul.mubr.bf16.gmra.mxu0 %v341
    %v380 = vpop.f32.mrf.mxu0
    %v381 = vadd.f32 %v222, %v380
    %v382 = vpop.f32.mrf.mxu0
    %v383 = vpop.f32.mrf.mxu0
    %v384 = vadd.f32 %v223, %v383
    %v385 = vpop.f32.mrf.mxu0
    %386 = vdwg.mxu0
    %v387 = vsel %vm339, %v381, -inf
    %388 = vmax.xlane.f32.xlu0 %v387
    %v389 = vpop.xlane.xlu0 %388
    %v390 = vsel %vm339, %v384, -inf
    %391 = vmax.xlane.f32.xlu0 %v390
    %v392 = vpop.xlane.xlu0 %391
    %v393 = vsub.f32 %v381, %v389
    %v394 = vsub.f32 %v384, %v392
    %v395 = vmul.f32 %v393, 1.442695
    %v396 = vpow.pop %v395
    %v397 = vmul.f32 %v394, 1.442695
    %v398 = vpow.pop %v397
    %v399 = vsel %vm339, %v396, 0.0
    %400 = vadd.xlane.f32.xlu0 %v399
    %v401 = vpop.xlane.xlu0 %400
    %v402 = vsel %vm339, %v398, 0.0
    %403 = vadd.xlane.f32.xlu0 %v402
    %v404 = vpop.xlane.xlu0 %403
    %v405 = vrcp.pop %v401
    %v406 = vrcp.pop %v404
    %v407 = vmul.f32 %v396, %v405
    %v408 = vmul.f32 %v398, %v406
    %v409 = vpack.c.bf16 %v408, %v407
    %410 = vrot.lane.b32.xlu0 %v335, 64
    %v411 = vpop.permute.xlu0 %410
    %v414 = vsel %vm339, %v409, 0
    %416 = vmatprep.subr.bf16.mxu0 0
    %417 = vmatpush1.bf16.msra.mxu0 0
    %418 = vmatprep.subr.bf16.mxu0 0
    %419 = vmatpush1.bf16.msra.mxu0 0
    %420 = vmatprep.subr.bf16.mxu0 0
    %421 = vmatpush1.bf16.msra.mxu0 0
    %422 = vmatprep.subr.bf16.mxu0 0
    %423 = vmatpush1.bf16.msra.mxu0 0
    %424 = vmatprep.subr.bf16.mxu0 0
    %425 = vmatpush1.bf16.msra.mxu0 0
    %426 = vmatprep.subr.bf16.mxu0 0
    %427 = vmatpush1.bf16.msra.mxu0 0
    %428 = vmatprep.subr.bf16.mxu0 0
    %429 = vmatpush1.bf16.msra.mxu0 0
    %430 = vmatprep.subr.bf16.mxu0 0
    %431 = vmatpush1.bf16.msra.mxu0 %v411
    %432 = vmatprep.subr.bf16.mxu0 0
    %433 = vmatpush2.bf16.msra.mxu0 0
    %434 = vmatprep.subr.bf16.mxu0 0
    %435 = vmatpush2.bf16.msra.mxu0 0
    %436 = vmatprep.subr.bf16.mxu0 0
    %437 = vmatpush2.bf16.msra.mxu0 0
    %438 = vmatprep.subr.bf16.mxu0 0
    %439 = vmatpush2.bf16.msra.mxu0 0
    %440 = vmatprep.subr.bf16.mxu0 0
    %441 = vmatpush2.bf16.msra.mxu0 0
    %442 = vmatprep.subr.bf16.mxu0 0
    %443 = vmatpush2.bf16.msra.mxu0 0
    %444 = vmatprep.subr.bf16.mxu0 0
    %445 = vmatpush2.bf16.msra.mxu0 0
    %446 = vmatprep.subr.bf16.mxu0 0
    %447 = vmatpush2.bf16.msra.mxu0 0
    %448 = vmatprep.mubr.bf16.mxu0 0
    %449 = vmatmul.mubr.bf16.gmra.mxu0 %v414
    %v450 = vpop.f32.mrf.mxu0
    %v451 = vadd.f32 0.0, %v450
    %v452 = vpop.f32.mrf.mxu0
    %v453 = vpop.f32.mrf.mxu0
    %v454 = vadd.f32 0.0, %v453
    %v455 = vpop.f32.mrf.mxu0
    %456 = vdwg.mxu0
    %457 = vrot.lane.b32.xlu0 %v335, 112
    %v458 = vpop.permute.xlu0 %457
    %459 = vrot.lane.b32.xlu0 %v335, 80
    %v460 = vpop.permute.xlu0 %459
    %v462 = vsel %vm339, %v458, 0
    %v465 = vsel %vm339, %v460, 0
    %467 = vmatprep.subr.bf16.mxu0 0
    %468 = vmatpush1.bf16.xpose.msra.mxu0 0
    %469 = vmatprep.subr.bf16.mxu0 0
    %470 = vmatpush1.bf16.xpose.msra.mxu0 0
    %471 = vmatprep.subr.bf16.mxu0 0
    %472 = vmatpush1.bf16.xpose.msra.mxu0 0
    %473 = vmatprep.subr.bf16.mxu0 0
    %474 = vmatpush1.bf16.xpose.msra.mxu0 0
    %475 = vmatprep.subr.bf16.mxu0 0
    %476 = vmatpush1.bf16.xpose.msra.mxu0 0
    %477 = vmatprep.subr.bf16.mxu0 0
    %478 = vmatpush1.bf16.xpose.msra.mxu0 0
    %479 = vmatprep.subr.bf16.mxu0 0
    %480 = vmatpush1.bf16.xpose.msra.mxu0 0
    %481 = vmatprep.subr.bf16.mxu0 0
    %482 = vmatpush1.bf16.xpose.msra.mxu0 %v465
    %483 = vmatprep.subr.bf16.mxu0 0
    %484 = vmatpush2.bf16.xpose.msra.mxu0 0
    %485 = vmatprep.subr.bf16.mxu0 0
    %486 = vmatpush2.bf16.xpose.msra.mxu0 0
    %487 = vmatprep.subr.bf16.mxu0 0
    %488 = vmatpush2.bf16.xpose.msra.mxu0 0
    %489 = vmatprep.subr.bf16.mxu0 0
    %490 = vmatpush2.bf16.xpose.msra.mxu0 0
    %491 = vmatprep.subr.bf16.mxu0 0
    %492 = vmatpush2.bf16.xpose.msra.mxu0 0
    %493 = vmatprep.subr.bf16.mxu0 0
    %494 = vmatpush2.bf16.xpose.msra.mxu0 0
    %495 = vmatprep.subr.bf16.mxu0 0
    %496 = vmatpush2.bf16.xpose.msra.mxu0 0
    %497 = vmatprep.subr.bf16.mxu0 0
    %498 = vmatpush2.bf16.xpose.msra.mxu0 0
    %499 = vmatprep.mubr.bf16.mxu0 0
    %500 = vmatmul.mubr.bf16.gmra.mxu0 %v462
    %v501 = vpop.f32.mrf.mxu0
    %v502 = vadd.f32 %v222, %v501
    %v503 = vpop.f32.mrf.mxu0
    %v504 = vpop.f32.mrf.mxu0
    %v505 = vadd.f32 %v223, %v504
    %v506 = vpop.f32.mrf.mxu0
    %507 = vdwg.mxu0
    %v508 = vsel %vm339, %v502, -inf
    %509 = vmax.xlane.f32.xlu0 %v508
    %v510 = vpop.xlane.xlu0 %509
    %v511 = vsel %vm339, %v505, -inf
    %512 = vmax.xlane.f32.xlu0 %v511
    %v513 = vpop.xlane.xlu0 %512
    %v514 = vsub.f32 %v502, %v510
    %v515 = vsub.f32 %v505, %v513
    %v516 = vmul.f32 %v514, 1.442695
    %v517 = vpow.pop %v516
    %v518 = vmul.f32 %v515, 1.442695
    %v519 = vpow.pop %v518
    %v520 = vsel %vm339, %v517, 0.0
    %521 = vadd.xlane.f32.xlu0 %v520
    %v522 = vpop.xlane.xlu0 %521
    %v523 = vsel %vm339, %v519, 0.0
    %524 = vadd.xlane.f32.xlu0 %v523
    %v525 = vpop.xlane.xlu0 %524
    %v526 = vrcp.pop %v522
    %v527 = vrcp.pop %v525
    %v528 = vmul.f32 %v517, %v526
    %v529 = vmul.f32 %v519, %v527
    %v530 = vpack.c.bf16 %v529, %v528
    %531 = vrot.lane.b32.xlu0 %v335, 48
    %v532 = vpop.permute.xlu0 %531
    %v535 = vsel %vm339, %v530, 0
    %537 = vmatprep.subr.bf16.mxu0 0
    %538 = vmatpush1.bf16.msra.mxu0 0
    %539 = vmatprep.subr.bf16.mxu0 0
    %540 = vmatpush1.bf16.msra.mxu0 0
    %541 = vmatprep.subr.bf16.mxu0 0
    %542 = vmatpush1.bf16.msra.mxu0 0
    %543 = vmatprep.subr.bf16.mxu0 0
    %544 = vmatpush1.bf16.msra.mxu0 0
    %545 = vmatprep.subr.bf16.mxu0 0
    %546 = vmatpush1.bf16.msra.mxu0 0
    %547 = vmatprep.subr.bf16.mxu0 0
    %548 = vmatpush1.bf16.msra.mxu0 0
    %549 = vmatprep.subr.bf16.mxu0 0
    %550 = vmatpush1.bf16.msra.mxu0 0
    %551 = vmatprep.subr.bf16.mxu0 0
    %552 = vmatpush1.bf16.msra.mxu0 %v532
    %553 = vmatprep.subr.bf16.mxu0 0
    %554 = vmatpush2.bf16.msra.mxu0 0
    %555 = vmatprep.subr.bf16.mxu0 0
    %556 = vmatpush2.bf16.msra.mxu0 0
    %557 = vmatprep.subr.bf16.mxu0 0
    %558 = vmatpush2.bf16.msra.mxu0 0
    %559 = vmatprep.subr.bf16.mxu0 0
    %560 = vmatpush2.bf16.msra.mxu0 0
    %561 = vmatprep.subr.bf16.mxu0 0
    %562 = vmatpush2.bf16.msra.mxu0 0
    %563 = vmatprep.subr.bf16.mxu0 0
    %564 = vmatpush2.bf16.msra.mxu0 0
    %565 = vmatprep.subr.bf16.mxu0 0
    %566 = vmatpush2.bf16.msra.mxu0 0
    %567 = vmatprep.subr.bf16.mxu0 0
    %568 = vmatpush2.bf16.msra.mxu0 0
    %569 = vmatprep.mubr.bf16.mxu0 0
    %570 = vmatmul.mubr.bf16.gmra.mxu0 %v535
    %v571 = vpop.f32.mrf.mxu0
    %v572 = vadd.f32 0.0, %v571
    %v573 = vpop.f32.mrf.mxu0
    %v574 = vpop.f32.mrf.mxu0
    %v575 = vadd.f32 0.0, %v574
    %v576 = vpop.f32.mrf.mxu0
    %577 = vdwg.mxu0
    %580 = vrot.lane.b32.xlu0 %v572, 16
    %v581 = vpop.permute.xlu0 %580
    %582 = vrot.lane.b32.xlu0 %v575, 16
    %v583 = vpop.permute.xlu0 %582
    %v586 = vsel %vm339, %v451, %v581
    %v587 = vsel %vm339, %v454, %v583
    %v588 = vpack.c.bf16 %v587, %v586
    %v589 = vld [vmem:[%s5] sm:$0xf]
    %v590 = vld [vmem:[%s5 + $0x4] sm:$0xf]
    %v591 = vld [vmem:[%s5 + $0x8] sm:$0xf]
    %v592 = vld [vmem:[%s5 + $0xc] sm:$0xf]
    %v593 = vld [vmem:[%s8 + $0xa] sm:$0x1]
    %v594 = vlaneseq
    %v595 = vshrl.u32 %v594, 7
    %v596 = vsub.s32 0, %v595
    %v597 = vrot.slane %v593, %v596
    %v602 = vunpack.c.l.b16 %v589
    %v603 = vunpack.c.l.b16 %v590
    %v604 = vunpack.c.l.b16 %v591
    %v605 = vunpack.c.l.b16 %v592
    %v606 = vpack.c.b16 %v603, %v602
    %v607 = vpack.c.b16 %v605, %v604
    %v611 = vsel %vm226, %v588, 0
    %613 = vmatprep.subr.bf16.mxu0 0
    %614 = vmatpush1.bf16.msra.mxu0 0
    %615 = vmatprep.subr.bf16.mxu0 0
    %616 = vmatpush1.bf16.msra.mxu0 0
    %617 = vmatprep.subr.bf16.mxu0 0
    %618 = vmatpush1.bf16.msra.mxu0 0
    %619 = vmatprep.subr.bf16.mxu0 0
    %620 = vmatpush1.bf16.msra.mxu0 0
    %621 = vmatprep.subr.bf16.mxu0 0
    %622 = vmatpush1.bf16.msra.mxu0 0
    %623 = vmatprep.subr.bf16.mxu0 0
    %624 = vmatpush1.bf16.msra.mxu0 0
    %625 = vmatprep.subr.bf16.mxu0 0
    %626 = vmatpush1.bf16.msra.mxu0 %v607
    %627 = vmatprep.subr.bf16.mxu0 0
    %628 = vmatpush1.bf16.msra.mxu0 %v606
    %629 = vmatprep.subr.bf16.mxu0 0
    %630 = vmatpush2.bf16.msra.mxu0 0
    %631 = vmatprep.subr.bf16.mxu0 0
    %632 = vmatpush2.bf16.msra.mxu0 0
    %633 = vmatprep.subr.bf16.mxu0 0
    %634 = vmatpush2.bf16.msra.mxu0 0
    %635 = vmatprep.subr.bf16.mxu0 0
    %636 = vmatpush2.bf16.msra.mxu0 0
    %637 = vmatprep.subr.bf16.mxu0 0
    %638 = vmatpush2.bf16.msra.mxu0 0
    %639 = vmatprep.subr.bf16.mxu0 0
    %640 = vmatpush2.bf16.msra.mxu0 0
    %641 = vmatprep.subr.bf16.mxu0 0
    %642 = vmatpush2.bf16.msra.mxu0 0
    %643 = vmatprep.subr.bf16.mxu0 0
    %644 = vmatpush2.bf16.msra.mxu0 0
    %645 = vmatprep.mubr.bf16.mxu0 0
    %646 = vmatmul.mubr.bf16.gmra.mxu0 %v611
    %v647 = vpop.f32.mrf.mxu0
    %v648 = vadd.f32 %v597, %v647
    %v649 = vpop.f32.mrf.mxu0
    %v650 = vpop.f32.mrf.mxu0
    %v651 = vadd.f32 %v597, %v650
    %v652 = vpop.f32.mrf.mxu0
    %653 = vdwg.mxu0
    %v654 = vadd.f32 %v220, %v648
    %v655 = vadd.f32 %v221, %v651
    %v656 = vld [vmem:[%s8 + $0x4] sm:$0x1]
    %v657 = vld [vmem:[%s8 + $0x6] sm:$0x1]
    %v658 = vsel %vm226, %v654, 0.0
    %659 = vadd.xlane.f32.xlu0 %v658
    %v660 = vpop.xlane.xlu0 %659
    %v661 = vsel %vm226, %v655, 0.0
    %662 = vadd.xlane.f32.xlu0 %v661
    %v663 = vpop.xlane.xlu0 %662
    %v664 = vmul.f32 %v654, %v654
    %v665 = vmul.f32 %v655, %v655
    %v666 = vsel %vm226, %v664, 0.0
    %667 = vadd.xlane.f32.xlu0 %v666
    %v668 = vpop.xlane.xlu0 %667
    %v669 = vsel %vm226, %v665, 0.0
    %670 = vadd.xlane.f32.xlu0 %v669
    %v671 = vpop.xlane.xlu0 %670
    %v672 = vmul.f32 %v660, 0.03125
    %v673 = vmul.f32 %v663, 0.03125
    %v674 = vmul.f32 %v668, 0.03125
    %v675 = vmul.f32 %v671, 0.03125
    %v676 = vmul.f32 %v672, %v672
    %v677 = vmul.f32 %v673, %v673
    %v678 = vsub.f32 %v674, %v676
    %v679 = vsub.f32 %v675, %v677
    %v680 = vsub.f32 %v654, %v672
    %v681 = vsub.f32 %v655, %v673
    %v682 = vadd.f32 %v678, 1e-12
    %v683 = vadd.f32 %v679, 1e-12
    %v684 = vrsqrt.pop %v682
    %v685 = vrsqrt.pop %v683
    %v686 = vmul.f32 %v680, %v684
    %v687 = vmul.f32 %v681, %v685
    %v688 = vlaneseq
    %v689 = vshrl.u32 %v688, 7
    %v690 = vsub.s32 0, %v689
    %v691 = vrot.slane %v656, %v690
    %v692 = vmul.f32 %v686, %v691
    %v693 = vmul.f32 %v687, %v691
    %v694 = vlaneseq
    %v695 = vshrl.u32 %v694, 7
    %v696 = vsub.s32 0, %v695
    %v697 = vrot.slane %v657, %v696
    %v698 = vadd.f32 %v692, %v697
    %v699 = vadd.f32 %v693, %v697
    %v700 = vpack.c.bf16 %v699, %v698
    %v701 = vld [vmem:[%s6] sm:$0xf]
    %v702 = vld [vmem:[%s6 + $0x4] sm:$0xf]
    %v703 = vld [vmem:[%s6 + $0x8] sm:$0xf]
    %v704 = vld [vmem:[%s6 + $0xc] sm:$0xf]
    %v705 = vld [vmem:[%s8 + $0xc] sm:$0x1]
    %v706 = vlaneseq
    %v707 = vshrl.u32 %v706, 7
    %v708 = vsub.s32 0, %v707
    %v709 = vrot.slane %v705, %v708
    %v714 = vunpack.c.l.b16 %v701
    %v715 = vunpack.c.l.b16 %v702
    %v716 = vunpack.c.l.b16 %v703
    %v717 = vunpack.c.l.b16 %v704
    %v718 = vpack.c.b16 %v715, %v714
    %v719 = vpack.c.b16 %v717, %v716
    %v723 = vsel %vm226, %v700, 0
    %725 = vmatprep.subr.bf16.mxu0 0
    %726 = vmatpush1.bf16.msra.mxu0 0
    %727 = vmatprep.subr.bf16.mxu0 0
    %728 = vmatpush1.bf16.msra.mxu0 0
    %729 = vmatprep.subr.bf16.mxu0 0
    %730 = vmatpush1.bf16.msra.mxu0 0
    %731 = vmatprep.subr.bf16.mxu0 0
    %732 = vmatpush1.bf16.msra.mxu0 0
    %733 = vmatprep.subr.bf16.mxu0 0
    %734 = vmatpush1.bf16.msra.mxu0 0
    %735 = vmatprep.subr.bf16.mxu0 0
    %736 = vmatpush1.bf16.msra.mxu0 0
    %737 = vmatprep.subr.bf16.mxu0 0
    %738 = vmatpush1.bf16.msra.mxu0 %v719
    %739 = vmatprep.subr.bf16.mxu0 0
    %740 = vmatpush1.bf16.msra.mxu0 %v718
    %741 = vmatprep.subr.bf16.mxu0 0
    %742 = vmatpush2.bf16.msra.mxu0 0
    %743 = vmatprep.subr.bf16.mxu0 0
    %744 = vmatpush2.bf16.msra.mxu0 0
    %745 = vmatprep.subr.bf16.mxu0 0
    %746 = vmatpush2.bf16.msra.mxu0 0
    %747 = vmatprep.subr.bf16.mxu0 0
    %748 = vmatpush2.bf16.msra.mxu0 0
    %749 = vmatprep.subr.bf16.mxu0 0
    %750 = vmatpush2.bf16.msra.mxu0 0
    %751 = vmatprep.subr.bf16.mxu0 0
    %752 = vmatpush2.bf16.msra.mxu0 0
    %753 = vmatprep.subr.bf16.mxu0 0
    %754 = vmatpush2.bf16.msra.mxu0 0
    %755 = vmatprep.subr.bf16.mxu0 0
    %756 = vmatpush2.bf16.msra.mxu0 0
    %757 = vmatprep.mubr.bf16.mxu0 0
    %758 = vmatmul.mubr.bf16.gmra.mxu0 %v723
    %v759 = vpop.f32.mrf.mxu0
    %v760 = vadd.f32 %v709, %v759
    %v761 = vpop.f32.mrf.mxu0
    %v762 = vpop.f32.mrf.mxu0
    %v763 = vadd.f32 %v709, %v762
    %v764 = vpop.f32.mrf.mxu0
    %765 = vdwg.mxu0
    %v766 = vmul.f32 %v760, %v760
    %v767 = vmul.f32 %v763, %v763
    %v768 = vmul.f32 %v760, %v766
    %v769 = vmul.f32 %v763, %v767
    %v770 = vmul.f32 %v768, 0.044715
    %v771 = vmul.f32 %v769, 0.044715
    %v772 = vadd.f32 %v760, %v770
    %v773 = vadd.f32 %v763, %v771
    %v774 = vmul.f32 %v772, 0.7978846
    %v775 = vmul.f32 %v773, 0.7978846
    %v776 = vtanh.pop %v774
    %v777 = vtanh.pop %v775
    %v778 = vadd.f32 %v776, 1.0
    %v779 = vadd.f32 %v777, 1.0
    %v780 = vmul.f32 %v778, 0.5
    %v781 = vmul.f32 %v779, 0.5
    %v782 = vmul.f32 %v760, %v780
    %v783 = vmul.f32 %v763, %v781
    %v784 = vpack.c.bf16 %v783, %v782
    %v785 = vld [vmem:[%s7] sm:$0xf]
    %v786 = vld [vmem:[%s7 + $0x4] sm:$0xf]
    %v787 = vld [vmem:[%s7 + $0x8] sm:$0xf]
    %v788 = vld [vmem:[%s7 + $0xc] sm:$0xf]
    %v789 = vld [vmem:[%s7 + $0x10] sm:$0xf]
    %v790 = vld [vmem:[%s7 + $0x14] sm:$0xf]
    %v791 = vld [vmem:[%s7 + $0x18] sm:$0xf]
    %v792 = vld [vmem:[%s7 + $0x1c] sm:$0xf]
    %v793 = vld [vmem:[%s8 + $0xe] sm:$0x1]
    %v794 = vlaneseq
    %v795 = vshrl.u32 %v794, 7
    %v796 = vsub.s32 0, %v795
    %v797 = vrot.slane %v793, %v796
    %v806 = vunpack.c.l.b16 %v785
    %v807 = vunpack.c.l.b16 %v786
    %v808 = vunpack.c.l.b16 %v787
    %v809 = vunpack.c.l.b16 %v788
    %v810 = vunpack.c.l.b16 %v789
    %v811 = vunpack.c.l.b16 %v790
    %v812 = vunpack.c.l.b16 %v791
    %v813 = vunpack.c.l.b16 %v792
    %v814 = vpack.c.b16 %v807, %v806
    %v815 = vpack.c.b16 %v809, %v808
    %v816 = vpack.c.b16 %v811, %v810
    %v817 = vpack.c.b16 %v813, %v812
    %vm822 = vcmask 523264
    %v824 = vsel %vm822, %v784, 0
    %826 = vmatprep.subr.bf16.mxu0 0
    %827 = vmatpush1.bf16.msra.mxu0 0
    %828 = vmatprep.subr.bf16.mxu0 0
    %829 = vmatpush1.bf16.msra.mxu0 0
    %830 = vmatprep.subr.bf16.mxu0 0
    %831 = vmatpush1.bf16.msra.mxu0 0
    %832 = vmatprep.subr.bf16.mxu0 0
    %833 = vmatpush1.bf16.msra.mxu0 0
    %834 = vmatprep.subr.bf16.mxu0 0
    %835 = vmatpush1.bf16.msra.mxu0 %v817
    %836 = vmatprep.subr.bf16.mxu0 0
    %837 = vmatpush1.bf16.msra.mxu0 %v816
    %838 = vmatprep.subr.bf16.mxu0 0
    %839 = vmatpush1.bf16.msra.mxu0 %v815
    %840 = vmatprep.subr.bf16.mxu0 0
    %841 = vmatpush1.bf16.msra.mxu0 %v814
    %842 = vmatprep.subr.bf16.mxu0 0
    %843 = vmatpush2.bf16.msra.mxu0 0
    %844 = vmatprep.subr.bf16.mxu0 0
    %845 = vmatpush2.bf16.msra.mxu0 0
    %846 = vmatprep.subr.bf16.mxu0 0
    %847 = vmatpush2.bf16.msra.mxu0 0
    %848 = vmatprep.subr.bf16.mxu0 0
    %849 = vmatpush2.bf16.msra.mxu0 0
    %850 = vmatprep.subr.bf16.mxu0 0
    %851 = vmatpush2.bf16.msra.mxu0 0
    %852 = vmatprep.subr.bf16.mxu0 0
    %853 = vmatpush2.bf16.msra.mxu0 0
    %854 = vmatprep.subr.bf16.mxu0 0
    %855 = vmatpush2.bf16.msra.mxu0 0
    %856 = vmatprep.subr.bf16.mxu0 0
    %857 = vmatpush2.bf16.msra.mxu0 0
    %858 = vmatprep.mubr.bf16.mxu0 0
    %859 = vmatmul.mubr.bf16.gmra.mxu0 %v824
    %v860 = vpop.f32.mrf.mxu0
    %v861 = vadd.f32 %v797, %v860
    %v862 = vpop.f32.mrf.mxu0
    %v863 = vpop.f32.mrf.mxu0
    %v864 = vadd.f32 %v797, %v863
    %v865 = vpop.f32.mrf.mxu0
    %866 = vdwg.mxu0
    %v867 = vadd.f32 %v654, %v861
    %v868 = vadd.f32 %v655, %v864
    %v869 = vld [vmem:[%s8 + $0x1] sm:$0x1]
    %v870 = vld [vmem:[%s8 + $0x3] sm:$0x1]
    %v871 = vsel %vm226, %v867, 0.0
    %872 = vadd.xlane.f32.xlu0 %v871
    %v873 = vpop.xlane.xlu0 %872
    %v874 = vsel %vm226, %v868, 0.0
    %875 = vadd.xlane.f32.xlu0 %v874
    %v876 = vpop.xlane.xlu0 %875
    %v877 = vmul.f32 %v867, %v867
    %v878 = vmul.f32 %v868, %v868
    %v879 = vsel %vm226, %v877, 0.0
    %880 = vadd.xlane.f32.xlu0 %v879
    %v881 = vpop.xlane.xlu0 %880
    %v882 = vsel %vm226, %v878, 0.0
    %883 = vadd.xlane.f32.xlu0 %v882
    %v884 = vpop.xlane.xlu0 %883
    %v885 = vmul.f32 %v873, 0.03125
    %v886 = vmul.f32 %v876, 0.03125
    %v887 = vmul.f32 %v881, 0.03125
    %v888 = vmul.f32 %v884, 0.03125
    %v889 = vmul.f32 %v885, %v885
    %v890 = vmul.f32 %v886, %v886
    %v891 = vsub.f32 %v887, %v889
    %v892 = vsub.f32 %v888, %v890
    %v893 = vsub.f32 %v867, %v885
    %v894 = vsub.f32 %v868, %v886
    %v895 = vadd.f32 %v891, 1e-12
    %v896 = vadd.f32 %v892, 1e-12
    %v897 = vrsqrt.pop %v895
    %v898 = vrsqrt.pop %v896
    %v899 = vmul.f32 %v893, %v897
    %v900 = vmul.f32 %v894, %v898
    %v901 = vlaneseq
    %v902 = vshrl.u32 %v901, 7
    %v903 = vsub.s32 0, %v902
    %v904 = vrot.slane %v869, %v903
    %v905 = vmul.f32 %v899, %v904
    %v906 = vmul.f32 %v900, %v904
    %v907 = vlaneseq
    %v908 = vshrl.u32 %v907, 7
    %v909 = vsub.s32 0, %v908
    %v910 = vrot.slane %v870, %v909
    %v911 = vadd.f32 %v905, %v910
    %v912 = vadd.f32 %v906, %v910
    %v913 = vpack.c.bf16 %v912, %v911
    %s914 = scalar_lea.vmem %s4, 16
    %v915 = vld [vmem:[%s914] sm:$0xf]
    %v916 = vld [vmem:[%s914 + $0x4] sm:$0xf]
    %v917 = vld [vmem:[%s914 + $0x8] sm:$0xf]
    %v918 = vld [vmem:[%s914 + $0xc] sm:$0xf]
    %v919 = vld [vmem:[%s8 + $0x9] sm:$0x1]
    %v920 = vlaneseq
    %v921 = vshrl.u32 %v920, 7
    %v922 = vsub.s32 0, %v921
    %v923 = vrot.slane %v919, %v922
    %v928 = vunpack.c.l.b16 %v915
    %v929 = vunpack.c.l.b16 %v916
    %v930 = vunpack.c.l.b16 %v917
    %v931 = vunpack.c.l.b16 %v918
    %v932 = vpack.c.b16 %v929, %v928
    %v933 = vpack.c.b16 %v931, %v930
    %v937 = vsel %vm226, %v913, 0
    %939 = vmatprep.subr.bf16.mxu0 0
    %940 = vmatpush1.bf16.msra.mxu0 0
    %941 = vmatprep.subr.bf16.mxu0 0
    %942 = vmatpush1.bf16.msra.mxu0 0
    %943 = vmatprep.subr.bf16.mxu0 0
    %944 = vmatpush1.bf16.msra.mxu0 0
    %945 = vmatprep.subr.bf16.mxu0 0
    %946 = vmatpush1.bf16.msra.mxu0 0
    %947 = vmatprep.subr.bf16.mxu0 0
    %948 = vmatpush1.bf16.msra.mxu0 0
    %949 = vmatprep.subr.bf16.mxu0 0
    %950 = vmatpush1.bf16.msra.mxu0 0
    %951 = vmatprep.subr.bf16.mxu0 0
    %952 = vmatpush1.bf16.msra.mxu0 %v933
    %953 = vmatprep.subr.bf16.mxu0 0
    %954 = vmatpush1.bf16.msra.mxu0 %v932
    %955 = vmatprep.subr.bf16.mxu0 0
    %956 = vmatpush2.bf16.msra.mxu0 0
    %957 = vmatprep.subr.bf16.mxu0 0
    %958 = vmatpush2.bf16.msra.mxu0 0
    %959 = vmatprep.subr.bf16.mxu0 0
    %960 = vmatpush2.bf16.msra.mxu0 0
    %961 = vmatprep.subr.bf16.mxu0 0
    %962 = vmatpush2.bf16.msra.mxu0 0
    %963 = vmatprep.subr.bf16.mxu0 0
    %964 = vmatpush2.bf16.msra.mxu0 0
    %965 = vmatprep.subr.bf16.mxu0 0
    %966 = vmatpush2.bf16.msra.mxu0 0
    %967 = vmatprep.subr.bf16.mxu0 0
    %968 = vmatpush2.bf16.msra.mxu0 0
    %969 = vmatprep.subr.bf16.mxu0 0
    %970 = vmatpush2.bf16.msra.mxu0 0
    %971 = vmatprep.mubr.bf16.mxu0 0
    %972 = vmatmul.mubr.bf16.gmra.mxu0 %v937
    %v973 = vpop.f32.mrf.mxu0
    %v974 = vadd.f32 %v923, %v973
    %v975 = vpop.f32.mrf.mxu0
    %v976 = vpop.f32.mrf.mxu0
    %v977 = vadd.f32 %v923, %v976
    %v978 = vpop.f32.mrf.mxu0
    %979 = vdwg.mxu0
    %v980 = vpack.c.bf16 %v977, %v974
    %982 = vrot.lane.b32.xlu0 %v980, 96
    %v983 = vpop.permute.xlu0 %982
    %v985 = vsel %vm339, %v980, 0
    %v988 = vsel %vm339, %v983, 0
    %990 = vmatprep.subr.bf16.mxu0 0
    %991 = vmatpush1.bf16.xpose.msra.mxu0 0
    %992 = vmatprep.subr.bf16.mxu0 0
    %993 = vmatpush1.bf16.xpose.msra.mxu0 0
    %994 = vmatprep.subr.bf16.mxu0 0
    %995 = vmatpush1.bf16.xpose.msra.mxu0 0
    %996 = vmatprep.subr.bf16.mxu0 0
    %997 = vmatpush1.bf16.xpose.msra.mxu0 0
    %998 = vmatprep.subr.bf16.mxu0 0
    %999 = vmatpush1.bf16.xpose.msra.mxu0 0
    %1000 = vmatprep.subr.bf16.mxu0 0
    %1001 = vmatpush1.bf16.xpose.msra.mxu0 0
    %1002 = vmatprep.subr.bf16.mxu0 0
    %1003 = vmatpush1.bf16.xpose.msra.mxu0 0
    %1004 = vmatprep.subr.bf16.mxu0 0
    %1005 = vmatpush1.bf16.xpose.msra.mxu0 %v988
    %1006 = vmatprep.subr.bf16.mxu0 0
    %1007 = vmatpush2.bf16.xpose.msra.mxu0 0
    %1008 = vmatprep.subr.bf16.mxu0 0
    %1009 = vmatpush2.bf16.xpose.msra.mxu0 0
    %1010 = vmatprep.subr.bf16.mxu0 0
    %1011 = vmatpush2.bf16.xpose.msra.mxu0 0
    %1012 = vmatprep.subr.bf16.mxu0 0
    %1013 = vmatpush2.bf16.xpose.msra.mxu0 0
    %1014 = vmatprep.subr.bf16.mxu0 0
    %1015 = vmatpush2.bf16.xpose.msra.mxu0 0
    %1016 = vmatprep.subr.bf16.mxu0 0
    %1017 = vmatpush2.bf16.xpose.msra.mxu0 0
    %1018 = vmatprep.subr.bf16.mxu0 0
    %1019 = vmatpush2.bf16.xpose.msra.mxu0 0
    %1020 = vmatprep.subr.bf16.mxu0 0
    %1021 = vmatpush2.bf16.xpose.msra.mxu0 0
    %1022 = vmatprep.mubr.bf16.mxu0 0
    %1023 = vmatmul.mubr.bf16.gmra.mxu0 %v985
    %v1024 = vpop.f32.mrf.mxu0
    %v1025 = vadd.f32 %v222, %v1024
    %v1026 = vpop.f32.mrf.mxu0
    %v1027 = vpop.f32.mrf.mxu0
    %v1028 = vadd.f32 %v223, %v1027
    %v1029 = vpop.f32.mrf.mxu0
    %1030 = vdwg.mxu0
    %v1031 = vsel %vm339, %v1025, -inf
    %1032 = vmax.xlane.f32.xlu0 %v1031
    %v1033 = vpop.xlane.xlu0 %1032
    %v1034 = vsel %vm339, %v1028, -inf
    %1035 = vmax.xlane.f32.xlu0 %v1034
    %v1036 = vpop.xlane.xlu0 %1035
    %v1037 = vsub.f32 %v1025, %v1033
    %v1038 = vsub.f32 %v1028, %v1036
    %v1039 = vmul.f32 %v1037, 1.442695
    %v1040 = vpow.pop %v1039
    %v1041 = vmul.f32 %v1038, 1.442695
    %v1042 = vpow.pop %v1041
    %v1043 = vsel %vm339, %v1040, 0.0
    %1044 = vadd.xlane.f32.xlu0 %v1043
    %v1045 = vpop.xlane.xlu0 %1044
    %v1046 = vsel %vm339, %v1042, 0.0
    %1047 = vadd.xlane.f32.xlu0 %v1046
    %v1048 = vpop.xlane.xlu0 %1047
    %v1049 = vrcp.pop %v1045
    %v1050 = vrcp.pop %v1048
    %v1051 = vmul.f32 %v1040, %v1049
    %v1052 = vmul.f32 %v1042, %v1050
    %v1053 = vpack.c.bf16 %v1052, %v1051
    %1054 = vrot.lane.b32.xlu0 %v980, 64
    %v1055 = vpop.permute.xlu0 %1054
    %v1058 = vsel %vm339, %v1053, 0
    %1060 = vmatprep.subr.bf16.mxu0 0
    %1061 = vmatpush1.bf16.msra.mxu0 0
    %1062 = vmatprep.subr.bf16.mxu0 0
    %1063 = vmatpush1.bf16.msra.mxu0 0
    %1064 = vmatprep.subr.bf16.mxu0 0
    %1065 = vmatpush1.bf16.msra.mxu0 0
    %1066 = vmatprep.subr.bf16.mxu0 0
    %1067 = vmatpush1.bf16.msra.mxu0 0
    %1068 = vmatprep.subr.bf16.mxu0 0
    %1069 = vmatpush1.bf16.msra.mxu0 0
    %1070 = vmatprep.subr.bf16.mxu0 0
    %1071 = vmatpush1.bf16.msra.mxu0 0
    %1072 = vmatprep.subr.bf16.mxu0 0
    %1073 = vmatpush1.bf16.msra.mxu0 0
    %1074 = vmatprep.subr.bf16.mxu0 0
    %1075 = vmatpush1.bf16.msra.mxu0 %v1055
    %1076 = vmatprep.subr.bf16.mxu0 0
    %1077 = vmatpush2.bf16.msra.mxu0 0
    %1078 = vmatprep.subr.bf16.mxu0 0
    %1079 = vmatpush2.bf16.msra.mxu0 0
    %1080 = vmatprep.subr.bf16.mxu0 0
    %1081 = vmatpush2.bf16.msra.mxu0 0
    %1082 = vmatprep.subr.bf16.mxu0 0
    %1083 = vmatpush2.bf16.msra.mxu0 0
    %1084 = vmatprep.subr.bf16.mxu0 0
    %1085 = vmatpush2.bf16.msra.mxu0 0
    %1086 = vmatprep.subr.bf16.mxu0 0
    %1087 = vmatpush2.bf16.msra.mxu0 0
    %1088 = vmatprep.subr.bf16.mxu0 0
    %1089 = vmatpush2.bf16.msra.mxu0 0
    %1090 = vmatprep.subr.bf16.mxu0 0
    %1091 = vmatpush2.bf16.msra.mxu0 0
    %1092 = vmatprep.mubr.bf16.mxu0 0
    %1093 = vmatmul.mubr.bf16.gmra.mxu0 %v1058
    %v1094 = vpop.f32.mrf.mxu0
    %v1095 = vadd.f32 0.0, %v1094
    %v1096 = vpop.f32.mrf.mxu0
    %v1097 = vpop.f32.mrf.mxu0
    %v1098 = vadd.f32 0.0, %v1097
    %v1099 = vpop.f32.mrf.mxu0
    %1100 = vdwg.mxu0
    %1101 = vrot.lane.b32.xlu0 %v980, 112
    %v1102 = vpop.permute.xlu0 %1101
    %1103 = vrot.lane.b32.xlu0 %v980, 80
    %v1104 = vpop.permute.xlu0 %1103
    %v1106 = vsel %vm339, %v1102, 0
    %v1109 = vsel %vm339, %v1104, 0
    %1111 = vmatprep.subr.bf16.mxu0 0
    %1112 = vmatpush1.bf16.xpose.msra.mxu0 0
    %1113 = vmatprep.subr.bf16.mxu0 0
    %1114 = vmatpush1.bf16.xpose.msra.mxu0 0
    %1115 = vmatprep.subr.bf16.mxu0 0
    %1116 = vmatpush1.bf16.xpose.msra.mxu0 0
    %1117 = vmatprep.subr.bf16.mxu0 0
    %1118 = vmatpush1.bf16.xpose.msra.mxu0 0
    %1119 = vmatprep.subr.bf16.mxu0 0
    %1120 = vmatpush1.bf16.xpose.msra.mxu0 0
    %1121 = vmatprep.subr.bf16.mxu0 0
    %1122 = vmatpush1.bf16.xpose.msra.mxu0 0
    %1123 = vmatprep.subr.bf16.mxu0 0
    %1124 = vmatpush1.bf16.xpose.msra.mxu0 0
    %1125 = vmatprep.subr.bf16.mxu0 0
    %1126 = vmatpush1.bf16.xpose.msra.mxu0 %v1109
    %1127 = vmatprep.subr.bf16.mxu0 0
    %1128 = vmatpush2.bf16.xpose.msra.mxu0 0
    %1129 = vmatprep.subr.bf16.mxu0 0
    %1130 = vmatpush2.bf16.xpose.msra.mxu0 0
    %1131 = vmatprep.subr.bf16.mxu0 0
    %1132 = vmatpush2.bf16.xpose.msra.mxu0 0
    %1133 = vmatprep.subr.bf16.mxu0 0
    %1134 = vmatpush2.bf16.xpose.msra.mxu0 0
    %1135 = vmatprep.subr.bf16.mxu0 0
    %1136 = vmatpush2.bf16.xpose.msra.mxu0 0
    %1137 = vmatprep.subr.bf16.mxu0 0
    %1138 = vmatpush2.bf16.xpose.msra.mxu0 0
    %1139 = vmatprep.subr.bf16.mxu0 0
    %1140 = vmatpush2.bf16.xpose.msra.mxu0 0
    %1141 = vmatprep.subr.bf16.mxu0 0
    %1142 = vmatpush2.bf16.xpose.msra.mxu0 0
    %1143 = vmatprep.mubr.bf16.mxu0 0
    %1144 = vmatmul.mubr.bf16.gmra.mxu0 %v1106
    %v1145 = vpop.f32.mrf.mxu0
    %v1146 = vadd.f32 %v222, %v1145
    %v1147 = vpop.f32.mrf.mxu0
    %v1148 = vpop.f32.mrf.mxu0
    %v1149 = vadd.f32 %v223, %v1148
    %v1150 = vpop.f32.mrf.mxu0
    %1151 = vdwg.mxu0
    %v1152 = vsel %vm339, %v1146, -inf
    %1153 = vmax.xlane.f32.xlu0 %v1152
    %v1154 = vpop.xlane.xlu0 %1153
    %v1155 = vsel %vm339, %v1149, -inf
    %1156 = vmax.xlane.f32.xlu0 %v1155
    %v1157 = vpop.xlane.xlu0 %1156
    %v1158 = vsub.f32 %v1146, %v1154
    %v1159 = vsub.f32 %v1149, %v1157
    %v1160 = vmul.f32 %v1158, 1.442695
    %v1161 = vpow.pop %v1160
    %v1162 = vmul.f32 %v1159, 1.442695
    %v1163 = vpow.pop %v1162
    %v1164 = vsel %vm339, %v1161, 0.0
    %1165 = vadd.xlane.f32.xlu0 %v1164
    %v1166 = vpop.xlane.xlu0 %1165
    %v1167 = vsel %vm339, %v1163, 0.0
    %1168 = vadd.xlane.f32.xlu0 %v1167
    %v1169 = vpop.xlane.xlu0 %1168
    %v1170 = vrcp.pop %v1166
    %v1171 = vrcp.pop %v1169
    %v1172 = vmul.f32 %v1161, %v1170
    %v1173 = vmul.f32 %v1163, %v1171
    %v1174 = vpack.c.bf16 %v1173, %v1172
    %1175 = vrot.lane.b32.xlu0 %v980, 48
    %v1176 = vpop.permute.xlu0 %1175
    %v1179 = vsel %vm339, %v1174, 0
    %1181 = vmatprep.subr.bf16.mxu0 0
    %1182 = vmatpush1.bf16.msra.mxu0 0
    %1183 = vmatprep.subr.bf16.mxu0 0
    %1184 = vmatpush1.bf16.msra.mxu0 0
    %1185 = vmatprep.subr.bf16.mxu0 0
    %1186 = vmatpush1.bf16.msra.mxu0 0
    %1187 = vmatprep.subr.bf16.mxu0 0
    %1188 = vmatpush1.bf16.msra.mxu0 0
    %1189 = vmatprep.subr.bf16.mxu0 0
    %1190 = vmatpush1.bf16.msra.mxu0 0
    %1191 = vmatprep.subr.bf16.mxu0 0
    %1192 = vmatpush1.bf16.msra.mxu0 0
    %1193 = vmatprep.subr.bf16.mxu0 0
    %1194 = vmatpush1.bf16.msra.mxu0 0
    %1195 = vmatprep.subr.bf16.mxu0 0
    %1196 = vmatpush1.bf16.msra.mxu0 %v1176
    %1197 = vmatprep.subr.bf16.mxu0 0
    %1198 = vmatpush2.bf16.msra.mxu0 0
    %1199 = vmatprep.subr.bf16.mxu0 0
    %1200 = vmatpush2.bf16.msra.mxu0 0
    %1201 = vmatprep.subr.bf16.mxu0 0
    %1202 = vmatpush2.bf16.msra.mxu0 0
    %1203 = vmatprep.subr.bf16.mxu0 0
    %1204 = vmatpush2.bf16.msra.mxu0 0
    %1205 = vmatprep.subr.bf16.mxu0 0
    %1206 = vmatpush2.bf16.msra.mxu0 0
    %1207 = vmatprep.subr.bf16.mxu0 0
    %1208 = vmatpush2.bf16.msra.mxu0 0
    %1209 = vmatprep.subr.bf16.mxu0 0
    %1210 = vmatpush2.bf16.msra.mxu0 0
    %1211 = vmatprep.subr.bf16.mxu0 0
    %1212 = vmatpush2.bf16.msra.mxu0 0
    %1213 = vmatprep.mubr.bf16.mxu0 0
    %1214 = vmatmul.mubr.bf16.gmra.mxu0 %v1179
    %v1215 = vpop.f32.mrf.mxu0
    %v1216 = vadd.f32 0.0, %v1215
    %v1217 = vpop.f32.mrf.mxu0
    %v1218 = vpop.f32.mrf.mxu0
    %v1219 = vadd.f32 0.0, %v1218
    %v1220 = vpop.f32.mrf.mxu0
    %1221 = vdwg.mxu0
    %1224 = vrot.lane.b32.xlu0 %v1216, 16
    %v1225 = vpop.permute.xlu0 %1224
    %1226 = vrot.lane.b32.xlu0 %v1219, 16
    %v1227 = vpop.permute.xlu0 %1226
    %v1230 = vsel %vm339, %v1095, %v1225
    %v1231 = vsel %vm339, %v1098, %v1227
    %v1232 = vpack.c.bf16 %v1231, %v1230
    %s1233 = scalar_lea.vmem %s5, 16
    %v1234 = vld [vmem:[%s1233] sm:$0xf]
    %v1235 = vld [vmem:[%s1233 + $0x4] sm:$0xf]
    %v1236 = vld [vmem:[%s1233 + $0x8] sm:$0xf]
    %v1237 = vld [vmem:[%s1233 + $0xc] sm:$0xf]
    %v1238 = vld [vmem:[%s8 + $0xb] sm:$0x1]
    %v1239 = vlaneseq
    %v1240 = vshrl.u32 %v1239, 7
    %v1241 = vsub.s32 0, %v1240
    %v1242 = vrot.slane %v1238, %v1241
    %v1247 = vunpack.c.l.b16 %v1234
    %v1248 = vunpack.c.l.b16 %v1235
    %v1249 = vunpack.c.l.b16 %v1236
    %v1250 = vunpack.c.l.b16 %v1237
    %v1251 = vpack.c.b16 %v1248, %v1247
    %v1252 = vpack.c.b16 %v1250, %v1249
    %v1256 = vsel %vm226, %v1232, 0
    %1258 = vmatprep.subr.bf16.mxu0 0
    %1259 = vmatpush1.bf16.msra.mxu0 0
    %1260 = vmatprep.subr.bf16.mxu0 0
    %1261 = vmatpush1.bf16.msra.mxu0 0
    %1262 = vmatprep.subr.bf16.mxu0 0
    %1263 = vmatpush1.bf16.msra.mxu0 0
    %1264 = vmatprep.subr.bf16.mxu0 0
    %1265 = vmatpush1.bf16.msra.mxu0 0
    %1266 = vmatprep.subr.bf16.mxu0 0
    %1267 = vmatpush1.bf16.msra.mxu0 0
    %1268 = vmatprep.subr.bf16.mxu0 0
    %1269 = vmatpush1.bf16.msra.mxu0 0
    %1270 = vmatprep.subr.bf16.mxu0 0
    %1271 = vmatpush1.bf16.msra.mxu0 %v1252
    %1272 = vmatprep.subr.bf16.mxu0 0
    %1273 = vmatpush1.bf16.msra.mxu0 %v1251
    %1274 = vmatprep.subr.bf16.mxu0 0
    %1275 = vmatpush2.bf16.msra.mxu0 0
    %1276 = vmatprep.subr.bf16.mxu0 0
    %1277 = vmatpush2.bf16.msra.mxu0 0
    %1278 = vmatprep.subr.bf16.mxu0 0
    %1279 = vmatpush2.bf16.msra.mxu0 0
    %1280 = vmatprep.subr.bf16.mxu0 0
    %1281 = vmatpush2.bf16.msra.mxu0 0
    %1282 = vmatprep.subr.bf16.mxu0 0
    %1283 = vmatpush2.bf16.msra.mxu0 0
    %1284 = vmatprep.subr.bf16.mxu0 0
    %1285 = vmatpush2.bf16.msra.mxu0 0
    %1286 = vmatprep.subr.bf16.mxu0 0
    %1287 = vmatpush2.bf16.msra.mxu0 0
    %1288 = vmatprep.subr.bf16.mxu0 0
    %1289 = vmatpush2.bf16.msra.mxu0 0
    %1290 = vmatprep.mubr.bf16.mxu0 0
    %1291 = vmatmul.mubr.bf16.gmra.mxu0 %v1256
    %v1292 = vpop.f32.mrf.mxu0
    %v1293 = vadd.f32 %v1242, %v1292
    %v1294 = vpop.f32.mrf.mxu0
    %v1295 = vpop.f32.mrf.mxu0
    %v1296 = vadd.f32 %v1242, %v1295
    %v1297 = vpop.f32.mrf.mxu0
    %1298 = vdwg.mxu0
    %v1299 = vadd.f32 %v867, %v1293
    %v1300 = vadd.f32 %v868, %v1296
    %v1301 = vld [vmem:[%s8 + $0x5] sm:$0x1]
    %v1302 = vld [vmem:[%s8 + $0x7] sm:$0x1]
    %v1303 = vsel %vm226, %v1299, 0.0
    %1304 = vadd.xlane.f32.xlu0 %v1303
    %v1305 = vpop.xlane.xlu0 %1304
    %v1306 = vsel %vm226, %v1300, 0.0
    %1307 = vadd.xlane.f32.xlu0 %v1306
    %v1308 = vpop.xlane.xlu0 %1307
    %v1309 = vmul.f32 %v1299, %v1299
    %v1310 = vmul.f32 %v1300, %v1300
    %v1311 = vsel %vm226, %v1309, 0.0
    %1312 = vadd.xlane.f32.xlu0 %v1311
    %v1313 = vpop.xlane.xlu0 %1312
    %v1314 = vsel %vm226, %v1310, 0.0
    %1315 = vadd.xlane.f32.xlu0 %v1314
    %v1316 = vpop.xlane.xlu0 %1315
    %v1317 = vmul.f32 %v1305, 0.03125
    %v1318 = vmul.f32 %v1308, 0.03125
    %v1319 = vmul.f32 %v1313, 0.03125
    %v1320 = vmul.f32 %v1316, 0.03125
    %v1321 = vmul.f32 %v1317, %v1317
    %v1322 = vmul.f32 %v1318, %v1318
    %v1323 = vsub.f32 %v1319, %v1321
    %v1324 = vsub.f32 %v1320, %v1322
    %v1325 = vsub.f32 %v1299, %v1317
    %v1326 = vsub.f32 %v1300, %v1318
    %v1327 = vadd.f32 %v1323, 1e-12
    %v1328 = vadd.f32 %v1324, 1e-12
    %v1329 = vrsqrt.pop %v1327
    %v1330 = vrsqrt.pop %v1328
    %v1331 = vmul.f32 %v1325, %v1329
    %v1332 = vmul.f32 %v1326, %v1330
    %v1333 = vlaneseq
    %v1334 = vshrl.u32 %v1333, 7
    %v1335 = vsub.s32 0, %v1334
    %v1336 = vrot.slane %v1301, %v1335
    %v1337 = vmul.f32 %v1331, %v1336
    %v1338 = vmul.f32 %v1332, %v1336
    %v1339 = vlaneseq
    %v1340 = vshrl.u32 %v1339, 7
    %v1341 = vsub.s32 0, %v1340
    %v1342 = vrot.slane %v1302, %v1341
    %v1343 = vadd.f32 %v1337, %v1342
    %v1344 = vadd.f32 %v1338, %v1342
    %v1345 = vpack.c.bf16 %v1344, %v1343
    %s1346 = scalar_lea.vmem %s6, 16
    %v1347 = vld [vmem:[%s1346] sm:$0xf]
    %v1348 = vld [vmem:[%s1346 + $0x4] sm:$0xf]
    %v1349 = vld [vmem:[%s1346 + $0x8] sm:$0xf]
    %v1350 = vld [vmem:[%s1346 + $0xc] sm:$0xf]
    %v1351 = vld [vmem:[%s8 + $0xd] sm:$0x1]
    %v1352 = vlaneseq
    %v1353 = vshrl.u32 %v1352, 7
    %v1354 = vsub.s32 0, %v1353
    %v1355 = vrot.slane %v1351, %v1354
    %v1360 = vunpack.c.l.b16 %v1347
    %v1361 = vunpack.c.l.b16 %v1348
    %v1362 = vunpack.c.l.b16 %v1349
    %v1363 = vunpack.c.l.b16 %v1350
    %v1364 = vpack.c.b16 %v1361, %v1360
    %v1365 = vpack.c.b16 %v1363, %v1362
    %v1369 = vsel %vm226, %v1345, 0
    %1371 = vmatprep.subr.bf16.mxu0 0
    %1372 = vmatpush1.bf16.msra.mxu0 0
    %1373 = vmatprep.subr.bf16.mxu0 0
    %1374 = vmatpush1.bf16.msra.mxu0 0
    %1375 = vmatprep.subr.bf16.mxu0 0
    %1376 = vmatpush1.bf16.msra.mxu0 0
    %1377 = vmatprep.subr.bf16.mxu0 0
    %1378 = vmatpush1.bf16.msra.mxu0 0
    %1379 = vmatprep.subr.bf16.mxu0 0
    %1380 = vmatpush1.bf16.msra.mxu0 0
    %1381 = vmatprep.subr.bf16.mxu0 0
    %1382 = vmatpush1.bf16.msra.mxu0 0
    %1383 = vmatprep.subr.bf16.mxu0 0
    %1384 = vmatpush1.bf16.msra.mxu0 %v1365
    %1385 = vmatprep.subr.bf16.mxu0 0
    %1386 = vmatpush1.bf16.msra.mxu0 %v1364
    %1387 = vmatprep.subr.bf16.mxu0 0
    %1388 = vmatpush2.bf16.msra.mxu0 0
    %1389 = vmatprep.subr.bf16.mxu0 0
    %1390 = vmatpush2.bf16.msra.mxu0 0
    %1391 = vmatprep.subr.bf16.mxu0 0
    %1392 = vmatpush2.bf16.msra.mxu0 0
    %1393 = vmatprep.subr.bf16.mxu0 0
    %1394 = vmatpush2.bf16.msra.mxu0 0
    %1395 = vmatprep.subr.bf16.mxu0 0
    %1396 = vmatpush2.bf16.msra.mxu0 0
    %1397 = vmatprep.subr.bf16.mxu0 0
    %1398 = vmatpush2.bf16.msra.mxu0 0
    %1399 = vmatprep.subr.bf16.mxu0 0
    %1400 = vmatpush2.bf16.msra.mxu0 0
    %1401 = vmatprep.subr.bf16.mxu0 0
    %1402 = vmatpush2.bf16.msra.mxu0 0
    %1403 = vmatprep.mubr.bf16.mxu0 0
    %1404 = vmatmul.mubr.bf16.gmra.mxu0 %v1369
    %v1405 = vpop.f32.mrf.mxu0
    %v1406 = vadd.f32 %v1355, %v1405
    %v1407 = vpop.f32.mrf.mxu0
    %v1408 = vpop.f32.mrf.mxu0
    %v1409 = vadd.f32 %v1355, %v1408
    %v1410 = vpop.f32.mrf.mxu0
    %1411 = vdwg.mxu0
    %v1412 = vmul.f32 %v1406, %v1406
    %v1413 = vmul.f32 %v1409, %v1409
    %v1414 = vmul.f32 %v1406, %v1412
    %v1415 = vmul.f32 %v1409, %v1413
    %v1416 = vmul.f32 %v1414, 0.044715
    %v1417 = vmul.f32 %v1415, 0.044715
    %v1418 = vadd.f32 %v1406, %v1416
    %v1419 = vadd.f32 %v1409, %v1417
    %v1420 = vmul.f32 %v1418, 0.7978846
    %v1421 = vmul.f32 %v1419, 0.7978846
    %v1422 = vtanh.pop %v1420
    %v1423 = vtanh.pop %v1421
    %v1424 = vadd.f32 %v1422, 1.0
    %v1425 = vadd.f32 %v1423, 1.0
    %v1426 = vmul.f32 %v1424, 0.5
    %v1427 = vmul.f32 %v1425, 0.5
    %v1428 = vmul.f32 %v1406, %v1426
    %v1429 = vmul.f32 %v1409, %v1427
    %v1430 = vpack.c.bf16 %v1429, %v1428
    %s1431 = scalar_lea.vmem %s7, 32
    %v1432 = vld [vmem:[%s1431] sm:$0xf]
    %v1433 = vld [vmem:[%s1431 + $0x4] sm:$0xf]
    %v1434 = vld [vmem:[%s1431 + $0x8] sm:$0xf]
    %v1435 = vld [vmem:[%s1431 + $0xc] sm:$0xf]
    %v1436 = vld [vmem:[%s1431 + $0x10] sm:$0xf]
    %v1437 = vld [vmem:[%s1431 + $0x14] sm:$0xf]
    %v1438 = vld [vmem:[%s1431 + $0x18] sm:$0xf]
    %v1439 = vld [vmem:[%s1431 + $0x1c] sm:$0xf]
    %v1440 = vld [vmem:[%s8 + $0xf] sm:$0x1]
    %v1441 = vlaneseq
    %v1442 = vshrl.u32 %v1441, 7
    %v1443 = vsub.s32 0, %v1442
    %v1444 = vrot.slane %v1440, %v1443
    %v1453 = vunpack.c.l.b16 %v1432
    %v1454 = vunpack.c.l.b16 %v1433
    %v1455 = vunpack.c.l.b16 %v1434
    %v1456 = vunpack.c.l.b16 %v1435
    %v1457 = vunpack.c.l.b16 %v1436
    %v1458 = vunpack.c.l.b16 %v1437
    %v1459 = vunpack.c.l.b16 %v1438
    %v1460 = vunpack.c.l.b16 %v1439
    %v1461 = vpack.c.b16 %v1454, %v1453
    %v1462 = vpack.c.b16 %v1456, %v1455
    %v1463 = vpack.c.b16 %v1458, %v1457
    %v1464 = vpack.c.b16 %v1460, %v1459
    %v1470 = vsel %vm822, %v1430, 0
    %1472 = vmatprep.subr.bf16.mxu0 0
    %1473 = vmatpush1.bf16.msra.mxu0 0
    %1474 = vmatprep.subr.bf16.mxu0 0
    %1475 = vmatpush1.bf16.msra.mxu0 0
    %1476 = vmatprep.subr.bf16.mxu0 0
    %1477 = vmatpush1.bf16.msra.mxu0 0
    %1478 = vmatprep.subr.bf16.mxu0 0
    %1479 = vmatpush1.bf16.msra.mxu0 0
    %1480 = vmatprep.subr.bf16.mxu0 0
    %1481 = vmatpush1.bf16.msra.mxu0 %v1464
    %1482 = vmatprep.subr.bf16.mxu0 0
    %1483 = vmatpush1.bf16.msra.mxu0 %v1463
    %1484 = vmatprep.subr.bf16.mxu0 0
    %1485 = vmatpush1.bf16.msra.mxu0 %v1462
    %1486 = vmatprep.subr.bf16.mxu0 0
    %1487 = vmatpush1.bf16.msra.mxu0 %v1461
    %1488 = vmatprep.subr.bf16.mxu0 0
    %1489 = vmatpush2.bf16.msra.mxu0 0
    %1490 = vmatprep.subr.bf16.mxu0 0
    %1491 = vmatpush2.bf16.msra.mxu0 0
    %1492 = vmatprep.subr.bf16.mxu0 0
    %1493 = vmatpush2.bf16.msra.mxu0 0
    %1494 = vmatprep.subr.bf16.mxu0 0
    %1495 = vmatpush2.bf16.msra.mxu0 0
    %1496 = vmatprep.subr.bf16.mxu0 0
    %1497 = vmatpush2.bf16.msra.mxu0 0
    %1498 = vmatprep.subr.bf16.mxu0 0
    %1499 = vmatpush2.bf16.msra.mxu0 0
    %1500 = vmatprep.subr.bf16.mxu0 0
    %1501 = vmatpush2.bf16.msra.mxu0 0
    %1502 = vmatprep.subr.bf16.mxu0 0
    %1503 = vmatpush2.bf16.msra.mxu0 0
    %1504 = vmatprep.mubr.bf16.mxu0 0
    %1505 = vmatmul.mubr.bf16.gmra.mxu0 %v1470
    %v1506 = vpop.f32.mrf.mxu0
    %v1507 = vadd.f32 %v1444, %v1506
    %v1508 = vpop.f32.mrf.mxu0
    %v1509 = vpop.f32.mrf.mxu0
    %v1510 = vadd.f32 %v1444, %v1509
    %v1511 = vpop.f32.mrf.mxu0
    %1512 = vdwg.mxu0
    %v1513 = vadd.f32 %v1299, %v1507
    %v1514 = vadd.f32 %v1300, %v1510
    %v1515 = vld [vmem:[%s8 + $0x10] sm:$0x1]
    %v1516 = vld [vmem:[%s8 + $0x11] sm:$0x1]
    %v1517 = vsel %vm226, %v1513, 0.0
    %1518 = vadd.xlane.f32.xlu0 %v1517
    %v1519 = vpop.xlane.xlu0 %1518
    %v1520 = vsel %vm226, %v1514, 0.0
    %1521 = vadd.xlane.f32.xlu0 %v1520
    %v1522 = vpop.xlane.xlu0 %1521
    %v1523 = vmul.f32 %v1513, %v1513
    %v1524 = vmul.f32 %v1514, %v1514
    %v1525 = vsel %vm226, %v1523, 0.0
    %1526 = vadd.xlane.f32.xlu0 %v1525
    %v1527 = vpop.xlane.xlu0 %1526
    %v1528 = vsel %vm226, %v1524, 0.0
    %1529 = vadd.xlane.f32.xlu0 %v1528
    %v1530 = vpop.xlane.xlu0 %1529
    %v1531 = vmul.f32 %v1519, 0.03125
    %v1532 = vmul.f32 %v1522, 0.03125
    %v1533 = vmul.f32 %v1527, 0.03125
    %v1534 = vmul.f32 %v1530, 0.03125
    %v1535 = vmul.f32 %v1531, %v1531
    %v1536 = vmul.f32 %v1532, %v1532
    %v1537 = vsub.f32 %v1533, %v1535
    %v1538 = vsub.f32 %v1534, %v1536
    %v1539 = vsub.f32 %v1513, %v1531
    %v1540 = vsub.f32 %v1514, %v1532
    %v1541 = vadd.f32 %v1537, 1e-12
    %v1542 = vadd.f32 %v1538, 1e-12
    %v1543 = vrsqrt.pop %v1541
    %v1544 = vrsqrt.pop %v1542
    %v1545 = vmul.f32 %v1539, %v1543
    %v1546 = vmul.f32 %v1540, %v1544
    %v1547 = vlaneseq
    %v1548 = vshrl.u32 %v1547, 7
    %v1549 = vsub.s32 0, %v1548
    %v1550 = vrot.slane %v1515, %v1549
    %v1551 = vmul.f32 %v1545, %v1550
    %v1552 = vmul.f32 %v1546, %v1550
    %v1553 = vlaneseq
    %v1554 = vshrl.u32 %v1553, 7
    %v1555 = vsub.s32 0, %v1554
    %v1556 = vrot.slane %v1516, %v1555
    %v1557 = vadd.f32 %v1551, %v1556
    %v1558 = vadd.f32 %v1552, %v1556
    %v1559 = vpack.c.bf16 %v1558, %v1557
    %v1560 = vld [vmem:[%s9] sm:$0xf]
    %v1561 = vld [vmem:[%s9 + $0x4] sm:$0xf]
    %v1562 = vld [vmem:[%s9 + $0x8] sm:$0xf]
    %v1563 = vld [vmem:[%s9 + $0xc] sm:$0xf]
    %v1564 = vld [vmem:[%s8 + $0x12] sm:$0x1]
    %v1565 = vlaneseq
    %v1566 = vshrl.u32 %v1565, 7
    %v1567 = vsub.s32 0, %v1566
    %v1568 = vrot.slane %v1564, %v1567
    %v1573 = vunpack.c.l.b16 %v1560
    %v1574 = vunpack.c.l.b16 %v1561
    %v1575 = vunpack.c.l.b16 %v1562
    %v1576 = vunpack.c.l.b16 %v1563
    %v1577 = vpack.c.b16 %v1574, %v1573
    %v1578 = vpack.c.b16 %v1576, %v1575
    %v1582 = vsel %vm226, %v1559, 0
    %1584 = vmatprep.subr.bf16.mxu0 0
    %1585 = vmatpush1.bf16.msra.mxu0 0
    %1586 = vmatprep.subr.bf16.mxu0 0
    %1587 = vmatpush1.bf16.msra.mxu0 0
    %1588 = vmatprep.subr.bf16.mxu0 0
    %1589 = vmatpush1.bf16.msra.mxu0 0
    %1590 = vmatprep.subr.bf16.mxu0 0
    %1591 = vmatpush1.bf16.msra.mxu0 0
    %1592 = vmatprep.subr.bf16.mxu0 0
    %1593 = vmatpush1.bf16.msra.mxu0 0
    %1594 = vmatprep.subr.bf16.mxu0 0
    %1595 = vmatpush1.bf16.msra.mxu0 0
    %1596 = vmatprep.subr.bf16.mxu0 0
    %1597 = vmatpush1.bf16.msra.mxu0 %v1578
    %1598 = vmatprep.subr.bf16.mxu0 0
    %1599 = vmatpush1.bf16.msra.mxu0 %v1577
    %1600 = vmatprep.subr.bf16.mxu0 0
    %1601 = vmatpush2.bf16.msra.mxu0 0
    %1602 = vmatprep.subr.bf16.mxu0 0
    %1603 = vmatpush2.bf16.msra.mxu0 0
    %1604 = vmatprep.subr.bf16.mxu0 0
    %1605 = vmatpush2.bf16.msra.mxu0 0
    %1606 = vmatprep.subr.bf16.mxu0 0
    %1607 = vmatpush2.bf16.msra.mxu0 0
    %1608 = vmatprep.subr.bf16.mxu0 0
    %1609 = vmatpush2.bf16.msra.mxu0 0
    %1610 = vmatprep.subr.bf16.mxu0 0
    %1611 = vmatpush2.bf16.msra.mxu0 0
    %1612 = vmatprep.subr.bf16.mxu0 0
    %1613 = vmatpush2.bf16.msra.mxu0 0
    %1614 = vmatprep.subr.bf16.mxu0 0
    %1615 = vmatpush2.bf16.msra.mxu0 0
    %1616 = vmatprep.mubr.bf16.mxu0 0
    %1617 = vmatmul.mubr.bf16.gmra.mxu0 %v1582
    %v1618 = vpop.f32.mrf.mxu0
    %v1619 = vadd.f32 %v1568, %v1618
    %v1620 = vpop.f32.mrf.mxu0
    %v1621 = vpop.f32.mrf.mxu0
    %v1622 = vadd.f32 %v1568, %v1621
    %v1623 = vpop.f32.mrf.mxu0
    %1624 = vdwg.mxu0
    %1625 = vst [vmem:[#allocation2] sm:$0xff] %v1619
    %1626 = vst [vmem:[#allocation2 + $0x8] sm:$0xff] %v1622
    // Predicated region
    $region42: #{tpu_custom_call.1} parent=1 // pred_check
      _
    $region43: #{tpu_custom_call.1} parent=1 // pred_check_branch
      %1628 = sbr.rel (0) target = $region45
    $region44: #{tpu_custom_call.1} parent=1 // pred_region
      %s1630 = ssub.s32 256, 256
      %1631 = vsyncadd [#allocation3], %s1630
      %s1632 = sshll.u32 [#allocation2], 4
      %s1633 = int_to_ptr.vmem [resolvable:$true] %s1632
      %1638 = dma.vmem_to_hbm [thread:$0]  %s1633, 256, %s10, [#allocation3], 128, 128, 8
    $region45: #{tpu_custom_call.1} parent=1 // pred_fallthru
      _
    // Predicated region
    $region46: #{tpu_custom_call.1} parent=1 // pred_check
      _
    $region47: #{tpu_custom_call.1} parent=1 // pred_check_branch
      %1640 = sbr.rel (0) target = $region49
    $region48: #{tpu_custom_call.1} parent=1 // pred_region
      %1641 = dma.done [#allocation3], 256
    $region49: #{tpu_custom_call.1} parent=1 // pred_fallthru
      _
    %1642 = vsyncpa [#allocation3], 1

</llo_original>
